<compile_context>
chip_gen: v7x
topology: tpu7x:2x2x1
jax: 0.10.0
libtpu: 0.0.40
codegen_flags: <defaults>
</compile_context>

<pallas_src>
import math

import jax
import jax.numpy as jnp
import numpy as np
from jax import lax
from jax.experimental import pallas as pl
from jax.experimental.pallas import tpu as pltpu

# ---------------- model hyper-params (small, synthetic) ----------------
D_MODEL = 32      # d_model
CTX_DIM = 48      # context_dim
N_HEAD = 4        # n_head
N_QUERIES = 8     # n_queries
HEAD_DIM = D_MODEL // N_HEAD
LN_EPS = 1e-5


def _layernorm(x, gamma, beta):
    mu = jnp.mean(x, axis=-1, keepdims=True)
    var = jnp.mean(jnp.square(x - mu), axis=-1, keepdims=True)
    return (x - mu) * lax.rsqrt(var + LN_EPS) * gamma + beta


def attentional_pooler_kernel(
    x_ref,      # (B, L, Dc)   f32   slab of B batch elements
    lnk_ref,    # (2, Dc)      f32   [gamma ; beta] of ln_k
    wk_ref,     # (Dc, D)      bf16  Wk^T (pre-transposed; bias dropped)
    wvo_ref,    # (Dc, H*D)    bf16  per-head WvT_h @ WoT_h, concatenated
    qblk_ref,   # (H*Q, D)     bf16  block-diagonal pre-scaled projected queries
    bias_ref,   # (1, D)       f32   bo + bv @ Wo^T
    o_ref,      # (B, Q, D)    f32   output block for this slab
):
    B, L, _ = x_ref.shape
    D, H, Q = D_MODEL, N_HEAD, N_QUERIES

    # ---- ln_k over context_dim (f32 on VPU/XLU/EUP) ----
    x = x_ref[...].astype(jnp.float32)                           # (B, L, Dc)
    g = lnk_ref[0:1, :]
    b = lnk_ref[1:2, :]
    mu = jnp.mean(x, axis=-1, keepdims=True)
    var = jnp.mean(jnp.square(x - mu), axis=-1, keepdims=True)
    xn = (x - mu) * lax.rsqrt(var + LN_EPS) * g + b              # (B, L, Dc)
    x2 = xn.reshape(B * L, CTX_DIM).astype(jnp.bfloat16)         # (B*L, Dc)

    # ---- key projection: (B*L, Dc) @ (Dc, D) on the MXU (bk cancels in softmax) ----
    k = jnp.dot(x2, wk_ref[...], preferred_element_type=jnp.float32)
    k = k.reshape(B, L, D).astype(jnp.bfloat16)                  # (B, L, D)

    # ---- fused value+output projection: u[..., h*D:(h+1)*D] = v_h @ Wo_h^T ----
    u = jnp.dot(x2, wvo_ref[...], preferred_element_type=jnp.float32)
    u = u.reshape(B, L, H * D).astype(jnp.bfloat16)              # (B, L, H*D)

    # ---- scores for all heads at once via block-diagonal queries ----
    qb = jnp.broadcast_to(qblk_ref[...][None], (B, H * Q, D))    # (B, H*Q, D)
    s = jnp.einsum("bid,bld->bil", qb, k,
                   preferred_element_type=jnp.float32)           # (B, H*Q, L)
    s = s - jnp.max(s, axis=-1, keepdims=True)
    p = jnp.exp(s)
    p = p * pl.reciprocal(jnp.sum(p, axis=-1, keepdims=True), approx=True)
    p16 = p.astype(jnp.bfloat16)

    # ---- per-head attention-weighted values, already in d_model space ----
    acc = jnp.zeros((B, Q, D), jnp.float32)
    for h in range(H):                                           # H=4, unrolled
        ph = p16[:, h * Q:(h + 1) * Q, :]                        # (B, Q, L)
        uh = u[:, :, h * D:(h + 1) * D]                          # (B, L, D)
        acc = acc + jnp.einsum("bql,bld->bqd", ph, uh,
                               preferred_element_type=jnp.float32)

    o_ref[...] = (acc + bias_ref[...]).astype(o_ref.dtype)


def _pick_block_batch(n, seq_len, target_rows=128):
    """Largest divisor B of n with B*seq_len <= max(seq_len, target_rows)."""
    best = 1
    for cand in range(1, n + 1):
        if n % cand == 0 and cand * seq_len <= max(seq_len, target_rows):
            best = cand
    return best


def attentional_pooler(x, params):
    """x: (N, L, context_dim) float32 -> (N, n_queries, d_model) float32."""
    N, L, Dc = x.shape
    Q, D = params["query"].shape
    assert Dc == CTX_DIM and D == D_MODEL
    H, hd = N_HEAD, HEAD_DIM

    # ---------- one-time parameter prep (hoisted out of the kernel) ----------
    # Query path is batch-independent: LN + Wq projection + softmax scale here.
    scale = 1.0 / math.sqrt(hd)
    qn = _layernorm(params["query"], params["lnq_g"], params["lnq_b"])      # (Q, D)
    qp = (qn @ params["wq"].T + params["bq"]) * scale                       # (Q, D)
    # Block-diagonal query matrix: row h*Q+q has head-h slice of qp, zeros elsewhere.
    eye = jnp.eye(H, dtype=qp.dtype)
    qblk = jnp.einsum("qhd,hg->hqgd", qp.reshape(Q, H, hd), eye)
    qblk = qblk.reshape(H * Q, H * hd).astype(jnp.bfloat16)                 # (H*Q, D)

    lnk = jnp.concatenate([params["lnk_g"], params["lnk_b"]], axis=0)       # (2, Dc)
    wk_t = params["wk"].T.astype(jnp.bfloat16)                              # (Dc, D)
    # Fuse Wv and Wo per head: wvo[:, h*D:(h+1)*D] = WvT[:, h*hd:(h+1)*hd] @ WoT_h
    wv_t = params["wv"].T.reshape(Dc, H, hd)
    wo_t = params["wo"].T.reshape(H, hd, D)
    wvo_t = jnp.einsum("chk,hkd->chd", wv_t, wo_t).reshape(Dc, H * D)
    wvo_t = wvo_t.astype(jnp.bfloat16)                                      # (Dc, H*D)
    # bk cancels in softmax; bv folds through Wo (softmax rows sum to 1).
    bias = params["bo"] + params["bv"] @ params["wo"].T                     # (1, D)

    # ---------- tiling: B batch elements per step so B*L fills MXU M dim ----------
    B = _pick_block_batch(N, L, target_rows=128)
    G = N // B

    def const_spec(shape):
        nd = len(shape)
        return pl.BlockSpec(shape, lambda n, _nd=nd: (0,) * _nd)

    in_specs = [
        pl.BlockSpec((B, L, Dc), lambda n: (n, 0, 0)),   # x slab
        const_spec(lnk.shape),
        const_spec(wk_t.shape),
        const_spec(wvo_t.shape),
        const_spec(qblk.shape),
        const_spec(bias.shape),
    ]
    out_spec = pl.BlockSpec((B, Q, D), lambda n: (n, 0, 0))

    return pl.pallas_call(
        attentional_pooler_kernel,
        out_shape=jax.ShapeDtypeStruct((N, Q, D), x.dtype),
        grid_spec=pltpu.PrefetchScalarGridSpec(
            num_scalar_prefetch=0,
            grid=(G,),
            in_specs=in_specs,
            out_specs=out_spec,
        ),
        compiler_params=pltpu.CompilerParams(
            dimension_semantics=("parallel",)),
    )(x, lnk, wk_t, wvo_t, qblk, bias)


def attentional_pooler_ref(x, params):
    """Pure-JAX f32 reference replicating torch nn.MultiheadAttention math."""
    xn = _layernorm(x, params["lnk_g"], params["lnk_b"])                # (N, L, Dc)
    qn = _layernorm(params["query"], params["lnq_g"], params["lnq_b"])  # (Q, D)
    q = qn @ params["wq"].T + params["bq"]                              # (Q, D)
    k = xn @ params["wk"].T + params["bk"]                              # (N, L, D)
    v = xn @ params["wv"].T + params["bv"]                              # (N, L, D)
    N, L, _ = x.shape
    Q = q.shape[0]
    qh = q.reshape(Q, N_HEAD, HEAD_DIM)
    kh = k.reshape(N, L, N_HEAD, HEAD_DIM)
    vh = v.reshape(N, L, N_HEAD, HEAD_DIM)
    s = jnp.einsum("qhd,nlhd->nhql", qh, kh) / math.sqrt(HEAD_DIM)
    p = jax.nn.softmax(s, axis=-1)
    o = jnp.einsum("nhql,nlhd->nqhd", p, vh).reshape(N, Q, D_MODEL)
    return o @ params["wo"].T + params["bo"]


def init_params(key):
    ks = jax.random.split(key, 8)
    f32 = jnp.float32
    return {
        "query": jax.random.normal(ks[0], (N_QUERIES, D_MODEL), f32),
        "lnk_g": jnp.ones((1, CTX_DIM), f32),
        "lnk_b": jnp.zeros((1, CTX_DIM), f32),
        "lnq_g": jnp.ones((1, D_MODEL), f32),
        "lnq_b": jnp.zeros((1, D_MODEL), f32),
        "wq": jax.random.normal(ks[1], (D_MODEL, D_MODEL), f32) * (1.0 / math.sqrt(D_MODEL)),
        "wk": jax.random.normal(ks[2], (D_MODEL, CTX_DIM), f32) * (1.0 / math.sqrt(CTX_DIM)),
        "wv": jax.random.normal(ks[3], (D_MODEL, CTX_DIM), f32) * (1.0 / math.sqrt(CTX_DIM)),
        "bq": jax.random.normal(ks[4], (1, D_MODEL), f32) * 0.02,
        "bk": jax.random.normal(ks[5], (1, D_MODEL), f32) * 0.02,
        "bv": jax.random.normal(ks[6], (1, D_MODEL), f32) * 0.02,
        "wo": jax.random.normal(ks[7], (D_MODEL, D_MODEL), f32) * (1.0 / math.sqrt(D_MODEL)),
        "bo": jnp.zeros((1, D_MODEL), f32),
    }


if __name__ == "__main__":
    key = jax.random.PRNGKey(0)
    k_params, k_x = jax.random.split(key)

    # Small shapes: N=8 batch, L=32 context tokens -> B=4 per step, grid=(2,)
    # (B*L = 128 rows for the fused projections; 2 parallel steps for megacore).
    N, L = 8, 32
    params = init_params(k_params)
    x = jax.random.normal(k_x, (N, L, CTX_DIM), jnp.float32)

    out = jax.block_until_ready(attentional_pooler(x, params))
    assert out.shape == (N, N_QUERIES, D_MODEL)

    ref = jax.block_until_ready(attentional_pooler_ref(x, params))
    # Tolerance accommodates bf16 MXU operands + approx-reciprocal softmax
    # (kernel accumulates in f32; reference is pure f32).
    np.testing.assert_allclose(np.asarray(out), np.asarray(ref), rtol=3e-2, atol=3e-2)

    print("KERNEL_OK")
</pallas_src>

<mosaic_0001>
module attributes {stable_mosaic.version = 11 : i64} {
  func.func @attentional_pooler_kernel(%arg0: i32, %arg1: memref<4x32x48xf32, #tpu.memory_space<vmem>>, %arg2: memref<2x48xf32, #tpu.memory_space<vmem>>, %arg3: memref<48x32xbf16, #tpu.memory_space<vmem>>, %arg4: memref<48x128xbf16, #tpu.memory_space<vmem>>, %arg5: memref<32x32xbf16, #tpu.memory_space<vmem>>, %arg6: memref<1x32xf32, #tpu.memory_space<vmem>>, %arg7: memref<4x8x32xf32, #tpu.memory_space<vmem>>) attributes {dimension_semantics = [#tpu.dimension_semantics<parallel>], iteration_bounds = array<i64: 2>, scalar_prefetch = 0 : i64, scratch_operands = 0 : i64, tpu.core_type = #tpu.core_type<tc>, window_params = [{transform_indices = @transform_0, window_bounds = array<i64: 4, 32, 48>}, {pipeline_mode = #tpu.pipeline_mode<synchronous>, transform_indices = @transform_1, window_bounds = array<i64: 2, 48>}, {pipeline_mode = #tpu.pipeline_mode<synchronous>, transform_indices = @transform_2, window_bounds = array<i64: 48, 32>}, {pipeline_mode = #tpu.pipeline_mode<synchronous>, transform_indices = @transform_3, window_bounds = array<i64: 48, 128>}, {pipeline_mode = #tpu.pipeline_mode<synchronous>, transform_indices = @transform_4, window_bounds = array<i64: 32, 32>}, {pipeline_mode = #tpu.pipeline_mode<synchronous>, transform_indices = @transform_5, window_bounds = array<i64: 1, 32>}, {transform_indices = @transform_6, window_bounds = array<i64: 4, 8, 32>}]} {
    %c0 = arith.constant 0 : index
    %c0_0 = arith.constant 0 : index
    %c0_1 = arith.constant 0 : index
    %0 = vector.load %arg1[%c0, %c0_0, %c0_1] : memref<4x32x48xf32, #tpu.memory_space<vmem>>, vector<4x32x48xf32>
    %c0_2 = arith.constant 0 : index
    %c0_3 = arith.constant 0 : index
    %1 = vector.load %arg2[%c0_2, %c0_3] : memref<2x48xf32, #tpu.memory_space<vmem>>, vector<1x48xf32>
    %c1 = arith.constant 1 : index
    %c0_4 = arith.constant 0 : index
    %2 = vector.load %arg2[%c1, %c0_4] : memref<2x48xf32, #tpu.memory_space<vmem>>, vector<1x48xf32>
    %cst = arith.constant dense<0.000000e+00> : vector<4x32xf32>
    %3 = vector.multi_reduction <add>, %0, %cst [2] : vector<4x32x48xf32> to vector<4x32xf32>
    %4 = vector.shape_cast %3 : vector<4x32xf32> to vector<4x32x1xf32>
    %cst_5 = arith.constant 4.800000e+01 : f32
    %5 = vector.broadcast %cst_5 : f32 to vector<4x32x1xf32>
    %6 = arith.divf %4, %5 : vector<4x32x1xf32>
    %7 = vector.broadcast %6 : vector<4x32x1xf32> to vector<4x32x48xf32>
    %8 = arith.subf %0, %7 : vector<4x32x48xf32>
    %9 = arith.mulf %8, %8 : vector<4x32x48xf32>
    %cst_6 = arith.constant dense<0.000000e+00> : vector<4x32xf32>
    %10 = vector.multi_reduction <add>, %9, %cst_6 [2] : vector<4x32x48xf32> to vector<4x32xf32>
    %11 = vector.shape_cast %10 : vector<4x32xf32> to vector<4x32x1xf32>
    %cst_7 = arith.constant 4.800000e+01 : f32
    %12 = vector.broadcast %cst_7 : f32 to vector<4x32x1xf32>
    %13 = arith.divf %11, %12 : vector<4x32x1xf32>
    %14 = vector.broadcast %6 : vector<4x32x1xf32> to vector<4x32x48xf32>
    %15 = arith.subf %0, %14 : vector<4x32x48xf32>
    %cst_8 = arith.constant 9.99999974E-6 : f32
    %16 = vector.broadcast %cst_8 : f32 to vector<4x32x1xf32>
    %17 = arith.addf %13, %16 : vector<4x32x1xf32>
    %18 = math.rsqrt %17 : vector<4x32x1xf32>
    %19 = vector.broadcast %18 : vector<4x32x1xf32> to vector<4x32x48xf32>
    %20 = arith.mulf %15, %19 : vector<4x32x48xf32>
    %21 = vector.shape_cast %1 : vector<1x48xf32> to vector<1x1x48xf32>
    %22 = vector.broadcast %21 : vector<1x1x48xf32> to vector<4x32x48xf32>
    %23 = arith.mulf %20, %22 : vector<4x32x48xf32>
    %24 = vector.shape_cast %2 : vector<1x48xf32> to vector<1x1x48xf32>
    %25 = vector.broadcast %24 : vector<1x1x48xf32> to vector<4x32x48xf32>
    %26 = arith.addf %23, %25 : vector<4x32x48xf32>
    %27 = vector.shape_cast %26 : vector<4x32x48xf32> to vector<128x48xf32>
    %28 = arith.truncf %27 : vector<128x48xf32> to vector<128x48xbf16>
    %c0_9 = arith.constant 0 : index
    %c0_10 = arith.constant 0 : index
    %29 = vector.load %arg3[%c0_9, %c0_10] : memref<48x32xbf16, #tpu.memory_space<vmem>>, vector<48x32xbf16>
    %cst_11 = arith.constant dense<0.000000e+00> : vector<128x32xf32>
    %30 = tpu.matmul %28, %29, %cst_11 {dimension_numbers = #tpu.dot_dimension_numbers<[1], [0], [0], [1], [0, 0, 1, 1], [], []>} : vector<128x48xbf16>, vector<48x32xbf16>, vector<128x32xf32> -> vector<128x32xf32>
    %31 = vector.shape_cast %30 : vector<128x32xf32> to vector<4x32x32xf32>
    %32 = arith.truncf %31 : vector<4x32x32xf32> to vector<4x32x32xbf16>
    %c0_12 = arith.constant 0 : index
    %c0_13 = arith.constant 0 : index
    %33 = vector.load %arg4[%c0_12, %c0_13] : memref<48x128xbf16, #tpu.memory_space<vmem>>, vector<48x128xbf16>
    %cst_14 = arith.constant dense<0.000000e+00> : vector<128x128xf32>
    %34 = tpu.matmul %28, %33, %cst_14 {dimension_numbers = #tpu.dot_dimension_numbers<[1], [0], [0], [1], [0, 0, 1, 1], [], []>} : vector<128x48xbf16>, vector<48x128xbf16>, vector<128x128xf32> -> vector<128x128xf32>
    %35 = vector.shape_cast %34 : vector<128x128xf32> to vector<4x32x128xf32>
    %36 = arith.truncf %35 : vector<4x32x128xf32> to vector<4x32x128xbf16>
    %c0_15 = arith.constant 0 : index
    %c0_16 = arith.constant 0 : index
    %37 = vector.load %arg5[%c0_15, %c0_16] : memref<32x32xbf16, #tpu.memory_space<vmem>>, vector<32x32xbf16>
    %38 = vector.shape_cast %37 : vector<32x32xbf16> to vector<1x32x32xbf16>
    %39 = vector.shape_cast %38 : vector<1x32x32xbf16> to vector<1x32x32xbf16>
    %40 = vector.broadcast %39 : vector<1x32x32xbf16> to vector<4x32x32xbf16>
    "tpu.trace_start"() <{level = 10 : i32, message = "bid,bld->bil"}> : () -> ()
    %cst_17 = arith.constant dense<0.000000e+00> : vector<4x32x32xf32>
    %41 = tpu.matmul %40, %32, %cst_17 {dimension_numbers = #tpu.dot_dimension_numbers<[2], [2], [1], [1], [0, 0, 0, 1, 1, 1], [0], [0]>} : vector<4x32x32xbf16>, vector<4x32x32xbf16>, vector<4x32x32xf32> -> vector<4x32x32xf32>
    "tpu.trace_stop"() : () -> ()
    %cst_18 = arith.constant dense<0xFF800000> : vector<4x32xf32>
    %42 = vector.multi_reduction <maximumf>, %41, %cst_18 [2] : vector<4x32x32xf32> to vector<4x32xf32>
    %43 = vector.shape_cast %42 : vector<4x32xf32> to vector<4x32x1xf32>
    %44 = vector.broadcast %43 : vector<4x32x1xf32> to vector<4x32x32xf32>
    %45 = arith.subf %41, %44 : vector<4x32x32xf32>
    %46 = math.exp %45 : vector<4x32x32xf32>
    %cst_19 = arith.constant dense<0.000000e+00> : vector<4x32xf32>
    %47 = vector.multi_reduction <add>, %46, %cst_19 [2] : vector<4x32x32xf32> to vector<4x32xf32>
    %48 = vector.shape_cast %47 : vector<4x32xf32> to vector<4x32x1xf32>
    %49 = tpu.reciprocal %48 {approx = true} : vector<4x32x1xf32> -> vector<4x32x1xf32>
    %50 = vector.broadcast %49 : vector<4x32x1xf32> to vector<4x32x32xf32>
    %51 = arith.mulf %46, %50 : vector<4x32x32xf32>
    %52 = arith.truncf %51 : vector<4x32x32xf32> to vector<4x32x32xbf16>
    %cst_20 = arith.constant 0.000000e+00 : f32
    %53 = vector.broadcast %cst_20 : f32 to vector<4x8x32xf32>
    %54 = vector.extract_strided_slice %52 {offsets = [0, 0, 0], sizes = [4, 8, 32], strides = [1, 1, 1]} : vector<4x32x32xbf16> to vector<4x8x32xbf16>
    %55 = vector.extract_strided_slice %36 {offsets = [0, 0, 0], sizes = [4, 32, 32], strides = [1, 1, 1]} : vector<4x32x128xbf16> to vector<4x32x32xbf16>
    "tpu.trace_start"() <{level = 10 : i32, message = "bql,bld->bqd"}> : () -> ()
    %cst_21 = arith.constant dense<0.000000e+00> : vector<4x8x32xf32>
    %56 = tpu.matmul %54, %55, %cst_21 {dimension_numbers = #tpu.dot_dimension_numbers<[2], [1], [1], [2], [0, 0, 0, 1, 1, 2], [0], [0]>} : vector<4x8x32xbf16>, vector<4x32x32xbf16>, vector<4x8x32xf32> -> vector<4x8x32xf32>
    "tpu.trace_stop"() : () -> ()
    %57 = arith.addf %53, %56 : vector<4x8x32xf32>
    %58 = vector.extract_strided_slice %52 {offsets = [0, 8, 0], sizes = [4, 8, 32], strides = [1, 1, 1]} : vector<4x32x32xbf16> to vector<4x8x32xbf16>
    %59 = vector.extract_strided_slice %36 {offsets = [0, 0, 32], sizes = [4, 32, 32], strides = [1, 1, 1]} : vector<4x32x128xbf16> to vector<4x32x32xbf16>
    "tpu.trace_start"() <{level = 10 : i32, message = "bql,bld->bqd"}> : () -> ()
    %cst_22 = arith.constant dense<0.000000e+00> : vector<4x8x32xf32>
    %60 = tpu.matmul %58, %59, %cst_22 {dimension_numbers = #tpu.dot_dimension_numbers<[2], [1], [1], [2], [0, 0, 0, 1, 1, 2], [0], [0]>} : vector<4x8x32xbf16>, vector<4x32x32xbf16>, vector<4x8x32xf32> -> vector<4x8x32xf32>
    "tpu.trace_stop"() : () -> ()
    %61 = arith.addf %57, %60 : vector<4x8x32xf32>
    %62 = vector.extract_strided_slice %52 {offsets = [0, 16, 0], sizes = [4, 8, 32], strides = [1, 1, 1]} : vector<4x32x32xbf16> to vector<4x8x32xbf16>
    %63 = vector.extract_strided_slice %36 {offsets = [0, 0, 64], sizes = [4, 32, 32], strides = [1, 1, 1]} : vector<4x32x128xbf16> to vector<4x32x32xbf16>
    "tpu.trace_start"() <{level = 10 : i32, message = "bql,bld->bqd"}> : () -> ()
    %cst_23 = arith.constant dense<0.000000e+00> : vector<4x8x32xf32>
    %64 = tpu.matmul %62, %63, %cst_23 {dimension_numbers = #tpu.dot_dimension_numbers<[2], [1], [1], [2], [0, 0, 0, 1, 1, 2], [0], [0]>} : vector<4x8x32xbf16>, vector<4x32x32xbf16>, vector<4x8x32xf32> -> vector<4x8x32xf32>
    "tpu.trace_stop"() : () -> ()
    %65 = arith.addf %61, %64 : vector<4x8x32xf32>
    %66 = vector.extract_strided_slice %52 {offsets = [0, 24, 0], sizes = [4, 8, 32], strides = [1, 1, 1]} : vector<4x32x32xbf16> to vector<4x8x32xbf16>
    %67 = vector.extract_strided_slice %36 {offsets = [0, 0, 96], sizes = [4, 32, 32], strides = [1, 1, 1]} : vector<4x32x128xbf16> to vector<4x32x32xbf16>
    "tpu.trace_start"() <{level = 10 : i32, message = "bql,bld->bqd"}> : () -> ()
    %cst_24 = arith.constant dense<0.000000e+00> : vector<4x8x32xf32>
    %68 = tpu.matmul %66, %67, %cst_24 {dimension_numbers = #tpu.dot_dimension_numbers<[2], [1], [1], [2], [0, 0, 0, 1, 1, 2], [0], [0]>} : vector<4x8x32xbf16>, vector<4x32x32xbf16>, vector<4x8x32xf32> -> vector<4x8x32xf32>
    "tpu.trace_stop"() : () -> ()
    %69 = arith.addf %65, %68 : vector<4x8x32xf32>
    %c0_25 = arith.constant 0 : index
    %c0_26 = arith.constant 0 : index
    %70 = vector.load %arg6[%c0_25, %c0_26] : memref<1x32xf32, #tpu.memory_space<vmem>>, vector<1x32xf32>
    %71 = vector.shape_cast %70 : vector<1x32xf32> to vector<1x1x32xf32>
    %72 = vector.broadcast %71 : vector<1x1x32xf32> to vector<4x8x32xf32>
    %73 = arith.addf %69, %72 : vector<4x8x32xf32>
    %c0_27 = arith.constant 0 : index
    %c0_28 = arith.constant 0 : index
    %c0_29 = arith.constant 0 : index
    %74 = vector.load %arg7[%c0_27, %c0_28, %c0_29] : memref<4x8x32xf32, #tpu.memory_space<vmem>>, vector<4x8x32xf32>
    tpu.vector_store %arg7[%c0_27, %c0_28, %c0_29], %73 {strides = array<i32>} : memref<4x8x32xf32, #tpu.memory_space<vmem>>, vector<4x8x32xf32>,
    return
  }
  func.func @transform_0(%arg0: i32) -> (i32, i32, i32) {
    %c0_i32 = arith.constant 0 : i32
    %c0_i32_0 = arith.constant 0 : i32
    %c0_i32_1 = arith.constant 0 : i32
    return %arg0, %c0_i32, %c0_i32_0 : i32, i32, i32
  }
  func.func @transform_1(%arg0: i32) -> (i32, i32) {
    %c0_i32 = arith.constant 0 : i32
    %c0_i32_0 = arith.constant 0 : i32
    %c0_i32_1 = arith.constant 0 : i32
    return %c0_i32, %c0_i32_0 : i32, i32
  }
  func.func @transform_2(%arg0: i32) -> (i32, i32) {
    %c0_i32 = arith.constant 0 : i32
    %c0_i32_0 = arith.constant 0 : i32
    %c0_i32_1 = arith.constant 0 : i32
    return %c0_i32, %c0_i32_0 : i32, i32
  }
  func.func @transform_3(%arg0: i32) -> (i32, i32) {
    %c0_i32 = arith.constant 0 : i32
    %c0_i32_0 = arith.constant 0 : i32
    %c0_i32_1 = arith.constant 0 : i32
    return %c0_i32, %c0_i32_0 : i32, i32
  }
  func.func @transform_4(%arg0: i32) -> (i32, i32) {
    %c0_i32 = arith.constant 0 : i32
    %c0_i32_0 = arith.constant 0 : i32
    %c0_i32_1 = arith.constant 0 : i32
    return %c0_i32, %c0_i32_0 : i32, i32
  }
  func.func @transform_5(%arg0: i32) -> (i32, i32) {
    %c0_i32 = arith.constant 0 : i32
    %c0_i32_0 = arith.constant 0 : i32
    %c0_i32_1 = arith.constant 0 : i32
    return %c0_i32, %c0_i32_0 : i32, i32
  }
  func.func @transform_6(%arg0: i32) -> (i32, i32, i32) {
    %c0_i32 = arith.constant 0 : i32
    %c0_i32_0 = arith.constant 0 : i32
    %c0_i32_1 = arith.constant 0 : i32
    return %arg0, %c0_i32, %c0_i32_0 : i32, i32, i32
  }
}

</mosaic_0001>

<llo_original>
// kernel: tpu_custom_call.1
$region0: #{tpu_custom_call.1}
  #allocation0 [shape = 'u32[]', space=smem, size = 0x4, offset = 0x4, fixed_abs, tag = 'smem constant byte address 0x4 - core index']
  #allocation1 [shape = 'u32[144,128]{1,0:T(1,128)}', space=vmem, size = 0x12000, scoped, tag = 'internal scratch']
  %s0 = inlined_call_operand.hbm [shape: f32[8,32,48], index: 0, kind: input, shape index: {}]
  %s1 = inlined_call_operand.vmem [shape: f32[2,48], index: 1, kind: input, shape index: {}]
  %s2 = inlined_call_operand.vmem [shape: bf16[48,32], index: 2, kind: input, shape index: {}]
  %s3 = inlined_call_operand.vmem [shape: bf16[48,128], index: 3, kind: input, shape index: {}]
  %s4 = inlined_call_operand.vmem [shape: bf16[32,32], index: 4, kind: input, shape index: {}]
  %s5 = inlined_call_operand.vmem [shape: f32[1,32], index: 5, kind: input, shape index: {}]
  %s6 = inlined_call_operand.hbm [shape: f32[8,8,32], index: 6, kind: output, shape index: {}]
  %s7 = sld [smem:[#allocation0]]
  $region61: #{tpu_custom_call.1} parent=0
    _
  %s9 = ssub.s32 1, %s7
  %s10 = scalar_select 0, %s9, %s7
  $region1: #{tpu_custom_call.1} parent=0
    #allocation2 [shape = 'u8[131072]{0}', space=vmem, size = 0x20000, scoped, tag = 'input window, operand 0']
    #allocation3 [shape = 's32[2]{0}', space=sflag, size = 0x8, scoped, tag = 'scoped memory for tpu_custom_call.1']
    #allocation4 [shape = 's32[2]{0}', space=sflag, size = 0x8, scoped, tag = 'scoped memory for tpu_custom_call.1']
    #allocation5 [shape = 'u8[32768]{0}', space=vmem, size = 0x8000, scoped, tag = 'output window, operand 0']
    %11 = vsyncpa [#allocation3], 0
    %s12 = scalar_lea.sflag [#allocation3], 1
    %13 = vsyncpa %s12, 0
    %14 = vsyncpa [#allocation4], 0
    %s15 = scalar_lea.sflag [#allocation4], 1
    %16 = vsyncpa %s15, 0
    loop: start=0, step=1, limit=4
    $region2: #{tpu_custom_call.1} parent=1 // loop_pre_header
      _
    $region3: #{tpu_custom_call.1} parent=1 // loop_header
      %s18 = sphi 0, %s22
      %p19 = scmp.ge.s32.totalorder %s18, 4
      %s28 = sphi 0, %s30
      %s31 = sphi 0, %s28
      %s32 = sphi 0, %s31
      %s48 = sphi 0, %s32
      %s52 = sphi 0, %s52
      %s54 = sphi 0, %s52
      %s55 = sphi 0, %s54
      %s69 = sphi 0, %s55
      %s73 = sphi 0, %s73
      %s75 = sphi 0, %s73
      %s76 = sphi 0, %s75
      %s90 = sphi 0, %s76
      %s94 = sphi 0, %s94
      %s96 = sphi 0, %s94
      %s97 = sphi 0, %s96
      %s111 = sphi 0, %s97
      %s115 = sphi 0, %s115
      %s117 = sphi 0, %s115
      %s118 = sphi 0, %s117
      %s132 = sphi 0, %s118
      %s136 = sphi 0, %s136
      %s138 = sphi 0, %s136
      %s139 = sphi 0, %s138
      %s153 = sphi 0, %s139
      %s159 = sphi 0, %s161
      %s162 = sphi 0, %s159
      %s163 = sphi 0, %s162
      %s179 = sphi 0, %s163
    $region4: #{tpu_custom_call.1} parent=1 // loop_header_branch
      %21 = sbr.rel (%p19) target = $region8
    $region5: #{tpu_custom_call.1} parent=1 // loop_body
      %s23 = ssub.s32 %s18, 1
      %s24 = ssub.s32 %s18, 2
      %s25 = sadd.s32 %s18, 1
      %s26 = ssub.s32 %s18, %s25
      %p27 = scmp.eq.s32.totalorder %s26, 0
      %s29 = sadd.s32 %s28, 1
      %s30 = scalar_select %p27, %s28, %s29
      %p33 = pneg %p27
      %p34 = scmp.eq.s32.totalorder %s18, 1
      %p35 = por %p33, %p34
      %p36 = scmp.ne.s32.totalorder %s28, %s31
      %p37 = scmp.eq.s32.totalorder %s18, 0
      %p38 = por %p36, %p37
      %p39 = scmp.ne.s32.totalorder %s28, %s31
      %p40 = scmp.eq.s32.totalorder %s23, 1
      %p41 = por %p39, %p40
      %p42 = scmp.ne.s32.totalorder %s31, %s32
      %p43 = scmp.eq.s32.totalorder %s23, 0
      %p44 = por %p42, %p43
      %p45 = scmp.ne.s32.totalorder %s31, %s32
      %p46 = scmp.eq.s32.totalorder %s24, 1
      %p47 = por %p45, %p46
      %p49 = scmp.ne.s32.totalorder %s32, %s48
      %p50 = scmp.eq.s32.totalorder %s24, 0
      %p51 = por %p49, %p50
      %s53 = sadd.s32 %s52, 1
      %p56 = scmp.eq.s32.totalorder %s18, 1
      %p57 = scmp.ne.s32.totalorder %s52, %s54
      %p58 = scmp.eq.s32.totalorder %s18, 0
      %p59 = por %p57, %p58
      %p60 = scmp.ne.s32.totalorder %s52, %s54
      %p61 = scmp.eq.s32.totalorder %s23, 1
      %p62 = por %p60, %p61
      %p63 = scmp.ne.s32.totalorder %s54, %s55
      %p64 = scmp.eq.s32.totalorder %s23, 0
      %p65 = por %p63, %p64
      %p66 = scmp.ne.s32.totalorder %s54, %s55
      %p67 = scmp.eq.s32.totalorder %s24, 1
      %p68 = por %p66, %p67
      %p70 = scmp.ne.s32.totalorder %s55, %s69
      %p71 = scmp.eq.s32.totalorder %s24, 0
      %p72 = por %p70, %p71
      %s74 = sadd.s32 %s73, 1
      %p77 = scmp.eq.s32.totalorder %s18, 1
      %p78 = scmp.ne.s32.totalorder %s73, %s75
      %p79 = scmp.eq.s32.totalorder %s18, 0
      %p80 = por %p78, %p79
      %p81 = scmp.ne.s32.totalorder %s73, %s75
      %p82 = scmp.eq.s32.totalorder %s23, 1
      %p83 = por %p81, %p82
      %p84 = scmp.ne.s32.totalorder %s75, %s76
      %p85 = scmp.eq.s32.totalorder %s23, 0
      %p86 = por %p84, %p85
      %p87 = scmp.ne.s32.totalorder %s75, %s76
      %p88 = scmp.eq.s32.totalorder %s24, 1
      %p89 = por %p87, %p88
      %p91 = scmp.ne.s32.totalorder %s76, %s90
      %p92 = scmp.eq.s32.totalorder %s24, 0
      %p93 = por %p91, %p92
      %s95 = sadd.s32 %s94, 1
      %p98 = scmp.eq.s32.totalorder %s18, 1
      %p99 = scmp.ne.s32.totalorder %s94, %s96
      %p100 = scmp.eq.s32.totalorder %s18, 0
      %p101 = por %p99, %p100
      %p102 = scmp.ne.s32.totalorder %s94, %s96
      %p103 = scmp.eq.s32.totalorder %s23, 1
      %p104 = por %p102, %p103
      %p105 = scmp.ne.s32.totalorder %s96, %s97
      %p106 = scmp.eq.s32.totalorder %s23, 0
      %p107 = por %p105, %p106
      %p108 = scmp.ne.s32.totalorder %s96, %s97
      %p109 = scmp.eq.s32.totalorder %s24, 1
      %p110 = por %p108, %p109
      %p112 = scmp.ne.s32.totalorder %s97, %s111
      %p113 = scmp.eq.s32.totalorder %s24, 0
      %p114 = por %p112, %p113
      %s116 = sadd.s32 %s115, 1
      %p119 = scmp.eq.s32.totalorder %s18, 1
      %p120 = scmp.ne.s32.totalorder %s115, %s117
      %p121 = scmp.eq.s32.totalorder %s18, 0
      %p122 = por %p120, %p121
      %p123 = scmp.ne.s32.totalorder %s115, %s117
      %p124 = scmp.eq.s32.totalorder %s23, 1
      %p125 = por %p123, %p124
      %p126 = scmp.ne.s32.totalorder %s117, %s118
      %p127 = scmp.eq.s32.totalorder %s23, 0
      %p128 = por %p126, %p127
      %p129 = scmp.ne.s32.totalorder %s117, %s118
      %p130 = scmp.eq.s32.totalorder %s24, 1
      %p131 = por %p129, %p130
      %p133 = scmp.ne.s32.totalorder %s118, %s132
      %p134 = scmp.eq.s32.totalorder %s24, 0
      %p135 = por %p133, %p134
      %s137 = sadd.s32 %s136, 1
      %p140 = scmp.eq.s32.totalorder %s18, 1
      %p141 = scmp.ne.s32.totalorder %s136, %s138
      %p142 = scmp.eq.s32.totalorder %s18, 0
      %p143 = por %p141, %p142
      %p144 = scmp.ne.s32.totalorder %s136, %s138
      %p145 = scmp.eq.s32.totalorder %s23, 1
      %p146 = por %p144, %p145
      %p147 = scmp.ne.s32.totalorder %s138, %s139
      %p148 = scmp.eq.s32.totalorder %s23, 0
      %p149 = por %p147, %p148
      %p150 = scmp.ne.s32.totalorder %s138, %s139
      %p151 = scmp.eq.s32.totalorder %s24, 1
      %p152 = por %p150, %p151
      %p154 = scmp.ne.s32.totalorder %s139, %s153
      %p155 = scmp.eq.s32.totalorder %s24, 0
      %p156 = por %p154, %p155
      %s157 = ssub.s32 %s18, %s25
      %p158 = scmp.eq.s32.totalorder %s157, 0
      %s160 = sadd.s32 %s159, 1
      %s161 = scalar_select %p158, %s159, %s160
      %p164 = pneg %p158
      %p165 = scmp.eq.s32.totalorder %s18, 1
      %p166 = por %p164, %p165
      %p167 = scmp.ne.s32.totalorder %s159, %s162
      %p168 = scmp.eq.s32.totalorder %s18, 0
      %p169 = por %p167, %p168
      %p170 = scmp.ne.s32.totalorder %s159, %s162
      %p171 = scmp.eq.s32.totalorder %s23, 1
      %p172 = por %p170, %p171
      %p173 = scmp.ne.s32.totalorder %s162, %s163
      %p174 = scmp.eq.s32.totalorder %s23, 0
      %p175 = por %p173, %p174
      %p176 = scmp.ne.s32.totalorder %s162, %s163
      %p177 = scmp.eq.s32.totalorder %s24, 1
      %p178 = por %p176, %p177
      %p180 = scmp.ne.s32.totalorder %s163, %s179
      %p181 = scmp.eq.s32.totalorder %s24, 0
      %p182 = por %p180, %p181
      %p183 = scmp.le.s32.totalorder 1, %s18
      %p184 = scmp.lt.s32.totalorder %s18, 3
      %p185 = pnand %p183, %p184
      %p186 = pneg %p185
      // Predicated region
      $region9: #{tpu_custom_call.1} parent=5 // pred_check
        _
      $region10: #{tpu_custom_call.1} parent=5 // pred_check_branch
        %188 = sbr.rel (%p185) target = $region12
      $region11: #{tpu_custom_call.1} parent=5 // pred_region
        %s189 = ssub.s32 %s18, 1
        // Predicated region
        $region13: #{tpu_custom_call.1} parent=11 // pred_check
          %p190 = pneg %p65
        $region14: #{tpu_custom_call.1} parent=11 // pred_check_branch
          %192 = sbr.rel (%p190) target = $region16
        $region15: #{tpu_custom_call.1} parent=11 // pred_region
          _
        $region16: #{tpu_custom_call.1} parent=11 // pred_fallthru
          _
        // Predicated region
        $region17: #{tpu_custom_call.1} parent=11 // pred_check
          %p193 = pneg %p86
        $region18: #{tpu_custom_call.1} parent=11 // pred_check_branch
          %195 = sbr.rel (%p193) target = $region20
        $region19: #{tpu_custom_call.1} parent=11 // pred_region
          _
        $region20: #{tpu_custom_call.1} parent=11 // pred_fallthru
          _
        // Predicated region
        $region21: #{tpu_custom_call.1} parent=11 // pred_check
          %p196 = pneg %p107
        $region22: #{tpu_custom_call.1} parent=11 // pred_check_branch
          %198 = sbr.rel (%p196) target = $region24
        $region23: #{tpu_custom_call.1} parent=11 // pred_region
          _
        $region24: #{tpu_custom_call.1} parent=11 // pred_fallthru
          _
        // Predicated region
        $region25: #{tpu_custom_call.1} parent=11 // pred_check
          %p199 = pneg %p128
        $region26: #{tpu_custom_call.1} parent=11 // pred_check_branch
          %201 = sbr.rel (%p199) target = $region28
        $region27: #{tpu_custom_call.1} parent=11 // pred_region
          _
        $region28: #{tpu_custom_call.1} parent=11 // pred_fallthru
          _
        // Predicated region
        $region29: #{tpu_custom_call.1} parent=11 // pred_check
          %p202 = pneg %p149
        $region30: #{tpu_custom_call.1} parent=11 // pred_check_branch
          %204 = sbr.rel (%p202) target = $region32
        $region31: #{tpu_custom_call.1} parent=11 // pred_region
          _
        $region32: #{tpu_custom_call.1} parent=11 // pred_fallthru
          _
      $region12: #{tpu_custom_call.1} parent=5 // pred_fallthru
        _
      %p205 = scmp.lt.s32.totalorder %s18, 2
      // Predicated region
      $region33: #{tpu_custom_call.1} parent=5 // pred_check
        %p206 = pneg %p205
      $region34: #{tpu_custom_call.1} parent=5 // pred_check_branch
        %208 = sbr.rel (%p206) target = $region36
      $region35: #{tpu_custom_call.1} parent=5 // pred_region
        // Predicated region
        $region37: #{tpu_custom_call.1} parent=35 // pred_check
          %p209 = pneg %p38
        $region38: #{tpu_custom_call.1} parent=35 // pred_check_branch
          %211 = sbr.rel (%p209) target = $region40
        $region39: #{tpu_custom_call.1} parent=35 // pred_region
          %s212 = sand.u32 %s28, 1
          %s213 = scalar_lea.sflag [#allocation3], %s212
          %s214 = sand.u32 %s28, 1
          %s215 = smul.addr %s214, 128
          %s216 = scalar_lea.vmem [#allocation2], %s215
          %s217 = smul.u32 4, %s18
          %s219 = ssub.s32 2048, 2048
          %220 = vsyncadd %s213, %s219
          %s221 = smul.addr %s217, 4
          %s222 = smul.addr %s221, 128
          %s223 = scalar_lea.hbm %s0, %s222
          %s224 = sshll.u32 %s216, 4
          %s225 = int_to_ptr.vmem [resolvable:$true] %s224
          %230 = dma.hbm_to_vmem [thread:$0]  %s223, 2048, %s225, %s213, 128, 128, 8
        $region40: #{tpu_custom_call.1} parent=35 // pred_fallthru
          _
      $region36: #{tpu_custom_call.1} parent=5 // pred_fallthru
        _
      %p231 = scmp.le.s32.totalorder 1, %s18
      %p232 = scmp.lt.s32.totalorder %s18, 3
      %p233 = pnand %p231, %p232
      %p234 = pneg %p233
      // Predicated region
      $region41: #{tpu_custom_call.1} parent=5 // pred_check
        _
      $region42: #{tpu_custom_call.1} parent=5 // pred_check_branch
        %236 = sbr.rel (%p233) target = $region44
      $region43: #{tpu_custom_call.1} parent=5 // pred_region
        %s237 = ssub.s32 %s18, 1
        %s238 = sand.u32 %s31, 1
        %s239 = scalar_lea.sflag [#allocation3], %s238
        %s240 = sand.u32 %s31, 1
        %s241 = smul.addr %s240, 128
        %s242 = scalar_lea.vmem [#allocation2], %s241
        // Predicated region
        $region45: #{tpu_custom_call.1} parent=43 // pred_check
          %p243 = pneg %p44
        $region46: #{tpu_custom_call.1} parent=43 // pred_check_branch
          %245 = sbr.rel (%p243) target = $region48
        $region47: #{tpu_custom_call.1} parent=43 // pred_region
          %246 = dma.done %s239, 2048
        $region48: #{tpu_custom_call.1} parent=43 // pred_fallthru
          _
        %s247 = sand.u32 %s31, 1
        %s248 = scalar_lea.sflag [#allocation3], %s247
        %s249 = sand.u32 %s31, 1
        %s250 = smul.addr %s249, 128
        %s251 = scalar_lea.vmem [#allocation2], %s250
        %p252 = pneg %p44
        %p253 = pneg %p41
        %p254 = pneg %p65
        %p255 = pneg %p62
        %p256 = pneg %p86
        %p257 = pneg %p83
        %p258 = pneg %p107
        %p259 = pneg %p104
        %p260 = pneg %p128
        %p261 = pneg %p125
        %p262 = pneg %p149
        %p263 = pneg %p146
        %p264 = pneg %p175
        %p265 = pneg %p172
        %s266 = sand.u32 %s162, 1
        %s267 = scalar_lea.sflag [#allocation4], %s266
        %s268 = sand.u32 %s162, 1
        %s269 = smul.addr %s268, 32
        %s270 = scalar_lea.vmem [#allocation5], %s269
        %s271 = smul.u32 4, %s23
        %s272 = smul.u32 4, %s23
        %v274 = vld [vmem:[%s242] sm:$0xff]
        %v275 = vld [vmem:[%s242 + $0x8] sm:$0xff]
        %v276 = vld [vmem:[%s242 + $0x10] sm:$0xff]
        %v277 = vld [vmem:[%s242 + $0x18] sm:$0xff]
        %v278 = vld [vmem:[%s242 + $0x20] sm:$0xff]
        %v279 = vld [vmem:[%s242 + $0x28] sm:$0xff]
        %v280 = vld [vmem:[%s242 + $0x30] sm:$0xff]
        %v281 = vld [vmem:[%s242 + $0x38] sm:$0xff]
        %v282 = vld [vmem:[%s242 + $0x40] sm:$0xff]
        %v283 = vld [vmem:[%s242 + $0x48] sm:$0xff]
        %v284 = vld [vmem:[%s242 + $0x50] sm:$0xff]
        %v285 = vld [vmem:[%s242 + $0x58] sm:$0xff]
        %v286 = vld [vmem:[%s242 + $0x60] sm:$0xff]
        %v287 = vld [vmem:[%s242 + $0x68] sm:$0xff]
        %v288 = vld [vmem:[%s242 + $0x70] sm:$0xff]
        %v289 = vld [vmem:[%s242 + $0x78] sm:$0xff]
        %v290 = vld [vmem:[%s1] sm:$0x1]
        %v291 = vld [vmem:[%s1 + $0x1] sm:$0x1]
        %vm292 = vcmask 392192
        %v293 = vsel %vm292, %v274, 0.0
        %294 = vadd.xlane.f32.xlu0 %v293
        %v295 = vpop.xlane.xlu0 %294
        %v296 = vsel %vm292, %v275, 0.0
        %297 = vadd.xlane.f32.xlu0 %v296
        %v298 = vpop.xlane.xlu0 %297
        %v299 = vsel %vm292, %v276, 0.0
        %300 = vadd.xlane.f32.xlu0 %v299
        %v301 = vpop.xlane.xlu0 %300
        %v302 = vsel %vm292, %v277, 0.0
        %303 = vadd.xlane.f32.xlu0 %v302
        %v304 = vpop.xlane.xlu0 %303
        %v305 = vsel %vm292, %v278, 0.0
        %306 = vadd.xlane.f32.xlu0 %v305
        %v307 = vpop.xlane.xlu0 %306
        %v308 = vsel %vm292, %v279, 0.0
        %309 = vadd.xlane.f32.xlu0 %v308
        %v310 = vpop.xlane.xlu0 %309
        %v311 = vsel %vm292, %v280, 0.0
        %312 = vadd.xlane.f32.xlu0 %v311
        %v313 = vpop.xlane.xlu0 %312
        %v314 = vsel %vm292, %v281, 0.0
        %315 = vadd.xlane.f32.xlu0 %v314
        %v316 = vpop.xlane.xlu0 %315
        %v317 = vsel %vm292, %v282, 0.0
        %318 = vadd.xlane.f32.xlu0 %v317
        %v319 = vpop.xlane.xlu0 %318
        %v320 = vsel %vm292, %v283, 0.0
        %321 = vadd.xlane.f32.xlu0 %v320
        %v322 = vpop.xlane.xlu0 %321
        %v323 = vsel %vm292, %v284, 0.0
        %324 = vadd.xlane.f32.xlu0 %v323
        %v325 = vpop.xlane.xlu0 %324
        %v326 = vsel %vm292, %v285, 0.0
        %327 = vadd.xlane.f32.xlu0 %v326
        %v328 = vpop.xlane.xlu0 %327
        %v329 = vsel %vm292, %v286, 0.0
        %330 = vadd.xlane.f32.xlu0 %v329
        %v331 = vpop.xlane.xlu0 %330
        %v332 = vsel %vm292, %v287, 0.0
        %333 = vadd.xlane.f32.xlu0 %v332
        %v334 = vpop.xlane.xlu0 %333
        %v335 = vsel %vm292, %v288, 0.0
        %336 = vadd.xlane.f32.xlu0 %v335
        %v337 = vpop.xlane.xlu0 %336
        %v338 = vsel %vm292, %v289, 0.0
        %339 = vadd.xlane.f32.xlu0 %v338
        %v340 = vpop.xlane.xlu0 %339
        %v341 = vrcp.pop 48.0
        %v342 = vmul.f32 %v295, %v341
        %v343 = vmul.f32 %v298, %v341
        %v344 = vmul.f32 %v301, %v341
        %v345 = vmul.f32 %v304, %v341
        %v346 = vmul.f32 %v307, %v341
        %v347 = vmul.f32 %v310, %v341
        %v348 = vmul.f32 %v313, %v341
        %v349 = vmul.f32 %v316, %v341
        %v350 = vmul.f32 %v319, %v341
        %v351 = vmul.f32 %v322, %v341
        %v352 = vmul.f32 %v325, %v341
        %v353 = vmul.f32 %v328, %v341
        %v354 = vmul.f32 %v331, %v341
        %v355 = vmul.f32 %v334, %v341
        %v356 = vmul.f32 %v337, %v341
        %v357 = vmul.f32 %v340, %v341
        %v358 = vsub.f32 %v274, %v342
        %v359 = vsub.f32 %v275, %v343
        %v360 = vsub.f32 %v276, %v344
        %v361 = vsub.f32 %v277, %v345
        %v362 = vsub.f32 %v278, %v346
        %v363 = vsub.f32 %v279, %v347
        %v364 = vsub.f32 %v280, %v348
        %v365 = vsub.f32 %v281, %v349
        %v366 = vsub.f32 %v282, %v350
        %v367 = vsub.f32 %v283, %v351
        %v368 = vsub.f32 %v284, %v352
        %v369 = vsub.f32 %v285, %v353
        %v370 = vsub.f32 %v286, %v354
        %v371 = vsub.f32 %v287, %v355
        %v372 = vsub.f32 %v288, %v356
        %v373 = vsub.f32 %v289, %v357
        %v374 = vmul.f32 %v358, %v358
        %v375 = vmul.f32 %v359, %v359
        %v376 = vmul.f32 %v360, %v360
        %v377 = vmul.f32 %v361, %v361
        %v378 = vmul.f32 %v362, %v362
        %v379 = vmul.f32 %v363, %v363
        %v380 = vmul.f32 %v364, %v364
        %v381 = vmul.f32 %v365, %v365
        %v382 = vmul.f32 %v366, %v366
        %v383 = vmul.f32 %v367, %v367
        %v384 = vmul.f32 %v368, %v368
        %v385 = vmul.f32 %v369, %v369
        %v386 = vmul.f32 %v370, %v370
        %v387 = vmul.f32 %v371, %v371
        %v388 = vmul.f32 %v372, %v372
        %v389 = vmul.f32 %v373, %v373
        %v390 = vsel %vm292, %v374, 0.0
        %391 = vadd.xlane.f32.xlu0 %v390
        %v392 = vpop.xlane.xlu0 %391
        %v393 = vsel %vm292, %v375, 0.0
        %394 = vadd.xlane.f32.xlu0 %v393
        %v395 = vpop.xlane.xlu0 %394
        %v396 = vsel %vm292, %v376, 0.0
        %397 = vadd.xlane.f32.xlu0 %v396
        %v398 = vpop.xlane.xlu0 %397
        %v399 = vsel %vm292, %v377, 0.0
        %400 = vadd.xlane.f32.xlu0 %v399
        %v401 = vpop.xlane.xlu0 %400
        %v402 = vsel %vm292, %v378, 0.0
        %403 = vadd.xlane.f32.xlu0 %v402
        %v404 = vpop.xlane.xlu0 %403
        %v405 = vsel %vm292, %v379, 0.0
        %406 = vadd.xlane.f32.xlu0 %v405
        %v407 = vpop.xlane.xlu0 %406
        %v408 = vsel %vm292, %v380, 0.0
        %409 = vadd.xlane.f32.xlu0 %v408
        %v410 = vpop.xlane.xlu0 %409
        %v411 = vsel %vm292, %v381, 0.0
        %412 = vadd.xlane.f32.xlu0 %v411
        %v413 = vpop.xlane.xlu0 %412
        %v414 = vsel %vm292, %v382, 0.0
        %415 = vadd.xlane.f32.xlu0 %v414
        %v416 = vpop.xlane.xlu0 %415
        %v417 = vsel %vm292, %v383, 0.0
        %418 = vadd.xlane.f32.xlu0 %v417
        %v419 = vpop.xlane.xlu0 %418
        %v420 = vsel %vm292, %v384, 0.0
        %421 = vadd.xlane.f32.xlu0 %v420
        %v422 = vpop.xlane.xlu0 %421
        %v423 = vsel %vm292, %v385, 0.0
        %424 = vadd.xlane.f32.xlu0 %v423
        %v425 = vpop.xlane.xlu0 %424
        %v426 = vsel %vm292, %v386, 0.0
        %427 = vadd.xlane.f32.xlu0 %v426
        %v428 = vpop.xlane.xlu0 %427
        %v429 = vsel %vm292, %v387, 0.0
        %430 = vadd.xlane.f32.xlu0 %v429
        %v431 = vpop.xlane.xlu0 %430
        %v432 = vsel %vm292, %v388, 0.0
        %433 = vadd.xlane.f32.xlu0 %v432
        %v434 = vpop.xlane.xlu0 %433
        %v435 = vsel %vm292, %v389, 0.0
        %436 = vadd.xlane.f32.xlu0 %v435
        %v437 = vpop.xlane.xlu0 %436
        %v438 = vmul.f32 %v392, %v341
        %v439 = vmul.f32 %v395, %v341
        %v440 = vmul.f32 %v398, %v341
        %v441 = vmul.f32 %v401, %v341
        %v442 = vmul.f32 %v404, %v341
        %v443 = vmul.f32 %v407, %v341
        %v444 = vmul.f32 %v410, %v341
        %v445 = vmul.f32 %v413, %v341
        %v446 = vmul.f32 %v416, %v341
        %v447 = vmul.f32 %v419, %v341
        %v448 = vmul.f32 %v422, %v341
        %v449 = vmul.f32 %v425, %v341
        %v450 = vmul.f32 %v428, %v341
        %v451 = vmul.f32 %v431, %v341
        %v452 = vmul.f32 %v434, %v341
        %v453 = vmul.f32 %v437, %v341
        %v454 = vadd.f32 %v438, 1e-05
        %v455 = vadd.f32 %v439, 1e-05
        %v456 = vadd.f32 %v440, 1e-05
        %v457 = vadd.f32 %v441, 1e-05
        %v458 = vadd.f32 %v442, 1e-05
        %v459 = vadd.f32 %v443, 1e-05
        %v460 = vadd.f32 %v444, 1e-05
        %v461 = vadd.f32 %v445, 1e-05
        %v462 = vadd.f32 %v446, 1e-05
        %v463 = vadd.f32 %v447, 1e-05
        %v464 = vadd.f32 %v448, 1e-05
        %v465 = vadd.f32 %v449, 1e-05
        %v466 = vadd.f32 %v450, 1e-05
        %v467 = vadd.f32 %v451, 1e-05
        %v468 = vadd.f32 %v452, 1e-05
        %v469 = vadd.f32 %v453, 1e-05
        %v470 = vrsqrt.pop %v454
        %v471 = vrsqrt.pop %v455
        %v472 = vrsqrt.pop %v456
        %v473 = vrsqrt.pop %v457
        %v474 = vrsqrt.pop %v458
        %v475 = vrsqrt.pop %v459
        %v476 = vrsqrt.pop %v460
        %v477 = vrsqrt.pop %v461
        %v478 = vrsqrt.pop %v462
        %v479 = vrsqrt.pop %v463
        %v480 = vrsqrt.pop %v464
        %v481 = vrsqrt.pop %v465
        %v482 = vrsqrt.pop %v466
        %v483 = vrsqrt.pop %v467
        %v484 = vrsqrt.pop %v468
        %v485 = vrsqrt.pop %v469
        %v486 = vmul.f32 %v358, %v470
        %v487 = vmul.f32 %v359, %v471
        %v488 = vmul.f32 %v360, %v472
        %v489 = vmul.f32 %v361, %v473
        %v490 = vmul.f32 %v362, %v474
        %v491 = vmul.f32 %v363, %v475
        %v492 = vmul.f32 %v364, %v476
        %v493 = vmul.f32 %v365, %v477
        %v494 = vmul.f32 %v366, %v478
        %v495 = vmul.f32 %v367, %v479
        %v496 = vmul.f32 %v368, %v480
        %v497 = vmul.f32 %v369, %v481
        %v498 = vmul.f32 %v370, %v482
        %v499 = vmul.f32 %v371, %v483
        %v500 = vmul.f32 %v372, %v484
        %v501 = vmul.f32 %v373, %v485
        %v502 = vlaneseq
        %v503 = vshrl.u32 %v502, 7
        %v504 = vsub.s32 0, %v503
        %v505 = vrot.slane %v290, %v504
        %v506 = vmul.f32 %v486, %v505
        %v507 = vmul.f32 %v487, %v505
        %v508 = vmul.f32 %v488, %v505
        %v509 = vmul.f32 %v489, %v505
        %v510 = vmul.f32 %v490, %v505
        %v511 = vmul.f32 %v491, %v505
        %v512 = vmul.f32 %v492, %v505
        %v513 = vmul.f32 %v493, %v505
        %v514 = vmul.f32 %v494, %v505
        %v515 = vmul.f32 %v495, %v505
        %v516 = vmul.f32 %v496, %v505
        %v517 = vmul.f32 %v497, %v505
        %v518 = vmul.f32 %v498, %v505
        %v519 = vmul.f32 %v499, %v505
        %v520 = vmul.f32 %v500, %v505
        %v521 = vmul.f32 %v501, %v505
        %v522 = vlaneseq
        %v523 = vshrl.u32 %v522, 7
        %v524 = vsub.s32 0, %v523
        %v525 = vrot.slane %v291, %v524
        %v526 = vadd.f32 %v506, %v525
        %v527 = vadd.f32 %v507, %v525
        %v528 = vadd.f32 %v508, %v525
        %v529 = vadd.f32 %v509, %v525
        %v530 = vadd.f32 %v510, %v525
        %v531 = vadd.f32 %v511, %v525
        %v532 = vadd.f32 %v512, %v525
        %v533 = vadd.f32 %v513, %v525
        %v534 = vadd.f32 %v514, %v525
        %v535 = vadd.f32 %v515, %v525
        %v536 = vadd.f32 %v516, %v525
        %v537 = vadd.f32 %v517, %v525
        %v538 = vadd.f32 %v518, %v525
        %v539 = vadd.f32 %v519, %v525
        %v540 = vadd.f32 %v520, %v525
        %v541 = vadd.f32 %v521, %v525
        %v542 = vpack.c.bf16 %v527, %v526
        %v543 = vpack.c.bf16 %v529, %v528
        %v544 = vpack.c.bf16 %v531, %v530
        %v545 = vpack.c.bf16 %v533, %v532
        %v546 = vpack.c.bf16 %v535, %v534
        %v547 = vpack.c.bf16 %v537, %v536
        %v548 = vpack.c.bf16 %v539, %v538
        %v549 = vpack.c.bf16 %v541, %v540
        %v550 = vld [vmem:[%s2] sm:$0xf]
        %v551 = vld [vmem:[%s2 + $0x4] sm:$0xf]
        %v552 = vld [vmem:[%s2 + $0x8] sm:$0xf]
        %v553 = vld [vmem:[%s2 + $0xc] sm:$0xf]
        %v554 = vld [vmem:[%s2 + $0x10] sm:$0xf]
        %v555 = vld [vmem:[%s2 + $0x14] sm:$0xf]
        %v562 = vunpack.c.l.b16 %v550
        %v563 = vunpack.c.l.b16 %v551
        %v564 = vunpack.c.l.b16 %v552
        %v565 = vunpack.c.l.b16 %v553
        %v566 = vunpack.c.l.b16 %v554
        %v567 = vunpack.c.l.b16 %v555
        %v568 = vpack.c.b16 %v563, %v562
        %v569 = vpack.c.b16 %v565, %v564
        %v570 = vpack.c.b16 %v567, %v566
        %v575 = vsel %vm292, %v542, 0
        %v578 = vsel %vm292, %v543, 0
        %v581 = vsel %vm292, %v544, 0
        %v584 = vsel %vm292, %v545, 0
        %v587 = vsel %vm292, %v546, 0
        %v590 = vsel %vm292, %v547, 0
        %v593 = vsel %vm292, %v548, 0
        %v596 = vsel %vm292, %v549, 0
        %598 = vmatprep.subr.bf16.mxu0 0
        %599 = vmatpush1.bf16.msra.mxu0 %v568
        %600 = vmatprep.subr.bf16.mxu0 0
        %601 = vmatpush1.bf16.msra.mxu0 %v569
        %602 = vmatprep.subr.bf16.mxu0 0
        %603 = vmatpush1.bf16.msra.mxu0 %v570
        %604 = vmatprep.subr.bf16.mxu0 0
        %605 = vmatpush1.bf16.msra.mxu0 0
        %606 = vmatprep.subr.bf16.mxu0 0
        %607 = vmatpush1.bf16.msra.mxu0 0
        %608 = vmatprep.subr.bf16.mxu0 0
        %609 = vmatpush1.bf16.msra.mxu0 0
        %610 = vmatprep.subr.bf16.mxu0 0
        %611 = vmatpush1.bf16.msra.mxu0 0
        %612 = vmatprep.subr.bf16.mxu0 0
        %613 = vmatpush1.bf16.msra.mxu0 0
        %614 = vmatprep.subr.bf16.mxu0 0
        %615 = vmatpush1.bf16.msra.mxu0 0
        %616 = vmatprep.subr.bf16.mxu0 0
        %617 = vmatpush1.bf16.msra.mxu0 0
        %618 = vmatprep.subr.bf16.mxu0 0
        %619 = vmatpush1.bf16.msra.mxu0 0
        %620 = vmatprep.subr.bf16.mxu0 0
        %621 = vmatpush1.bf16.msra.mxu0 0
        %622 = vmatprep.subr.bf16.mxu0 0
        %623 = vmatpush1.bf16.msra.mxu0 0
        %624 = vmatprep.subr.bf16.mxu0 0
        %625 = vmatpush1.bf16.msra.mxu0 0
        %626 = vmatprep.subr.bf16.mxu0 0
        %627 = vmatpush1.bf16.msra.mxu0 0
        %628 = vmatprep.subr.bf16.mxu0 0
        %629 = vmatpush1.bf16.msra.mxu0 0
        %630 = vmatprep.mubr.bf16.mxu0 0
        %631 = vmatmul.mubr.bf16.gmra.mrb[0].mxu0 %v575
        %v632 = vpop.f32.mrb[0].mxu0
        %v633 = vadd.f32 0.0, %v632
        %v634 = vpop.f32.mrb[0].mxu0
        %v635 = vpop.f32.mrb[0].mxu0
        %v636 = vadd.f32 0.0, %v635
        %v637 = vpop.f32.mrb[0].mxu0
        %638 = vmatprep.mubr.bf16.mxu0 0
        %639 = vmatmul.mubr.bf16.gmra.mrb[0].mxu0 %v578
        %v640 = vpop.f32.mrb[0].mxu0
        %v641 = vadd.f32 0.0, %v640
        %v642 = vpop.f32.mrb[0].mxu0
        %v643 = vpop.f32.mrb[0].mxu0
        %v644 = vadd.f32 0.0, %v643
        %v645 = vpop.f32.mrb[0].mxu0
        %646 = vmatprep.mubr.bf16.mxu0 0
        %647 = vmatmul.mubr.bf16.gmra.mrb[0].mxu0 %v581
        %v648 = vpop.f32.mrb[0].mxu0
        %v649 = vadd.f32 0.0, %v648
        %v650 = vpop.f32.mrb[0].mxu0
        %v651 = vpop.f32.mrb[0].mxu0
        %v652 = vadd.f32 0.0, %v651
        %v653 = vpop.f32.mrb[0].mxu0
        %654 = vmatprep.mubr.bf16.mxu0 0
        %655 = vmatmul.mubr.bf16.gmra.mrb[0].mxu0 %v584
        %v656 = vpop.f32.mrb[0].mxu0
        %v657 = vadd.f32 0.0, %v656
        %v658 = vpop.f32.mrb[0].mxu0
        %v659 = vpop.f32.mrb[0].mxu0
        %v660 = vadd.f32 0.0, %v659
        %v661 = vpop.f32.mrb[0].mxu0
        %662 = vmatprep.mubr.bf16.mxu0 0
        %663 = vmatmul.mubr.bf16.gmra.mrb[0].mxu0 %v587
        %v664 = vpop.f32.mrb[0].mxu0
        %v665 = vadd.f32 0.0, %v664
        %v666 = vpop.f32.mrb[0].mxu0
        %v667 = vpop.f32.mrb[0].mxu0
        %v668 = vadd.f32 0.0, %v667
        %v669 = vpop.f32.mrb[0].mxu0
        %670 = vmatprep.mubr.bf16.mxu0 0
        %671 = vmatmul.mubr.bf16.gmra.mrb[0].mxu0 %v590
        %v672 = vpop.f32.mrb[0].mxu0
        %v673 = vadd.f32 0.0, %v672
        %v674 = vpop.f32.mrb[0].mxu0
        %v675 = vpop.f32.mrb[0].mxu0
        %v676 = vadd.f32 0.0, %v675
        %v677 = vpop.f32.mrb[0].mxu0
        %678 = vmatprep.mubr.bf16.mxu0 0
        %679 = vmatmul.mubr.bf16.gmra.mrb[0].mxu0 %v593
        %v680 = vpop.f32.mrb[0].mxu0
        %v681 = vadd.f32 0.0, %v680
        %v682 = vpop.f32.mrb[0].mxu0
        %v683 = vpop.f32.mrb[0].mxu0
        %v684 = vadd.f32 0.0, %v683
        %v685 = vpop.f32.mrb[0].mxu0
        %686 = vmatprep.mubr.bf16.mxu0 0
        %687 = vmatmul.mubr.bf16.gmra.mrb[0].mxu0 %v596
        %v688 = vpop.f32.mrb[0].mxu0
        %v689 = vadd.f32 0.0, %v688
        %v690 = vpop.f32.mrb[0].mxu0
        %v691 = vpop.f32.mrb[0].mxu0
        %v692 = vadd.f32 0.0, %v691
        %v693 = vpop.f32.mrb[0].mxu0
        %694 = vdwg.mxu0
        %v695 = vpack.c.bf16 %v636, %v633
        %v696 = vpack.c.bf16 %v644, %v641
        %v697 = vpack.c.bf16 %v652, %v649
        %v698 = vpack.c.bf16 %v660, %v657
        %v699 = vpack.c.bf16 %v668, %v665
        %v700 = vpack.c.bf16 %v676, %v673
        %v701 = vpack.c.bf16 %v684, %v681
        %v702 = vpack.c.bf16 %v692, %v689
        %v703 = vld [vmem:[%s3] sm:$0xf]
        %v704 = vld [vmem:[%s3 + $0x4] sm:$0xf]
        %v705 = vld [vmem:[%s3 + $0x8] sm:$0xf]
        %v706 = vld [vmem:[%s3 + $0xc] sm:$0xf]
        %v707 = vld [vmem:[%s3 + $0x10] sm:$0xf]
        %v708 = vld [vmem:[%s3 + $0x14] sm:$0xf]
        %v715 = vunpack.c.l.b16 %v703
        %v716 = vunpack.c.l.b16 %v704
        %v717 = vunpack.c.l.b16 %v705
        %v718 = vunpack.c.l.b16 %v706
        %v719 = vunpack.c.l.b16 %v707
        %v720 = vunpack.c.l.b16 %v708
        %v721 = vpack.c.b16 %v716, %v715
        %v722 = vpack.c.b16 %v718, %v717
        %v723 = vpack.c.b16 %v720, %v719
        %727 = vmatprep.subr.bf16.mxu0 0
        %728 = vmatpush1.bf16.msra.mxu0 %v721
        %729 = vmatprep.subr.bf16.mxu0 0
        %730 = vmatpush1.bf16.msra.mxu0 %v722
        %731 = vmatprep.subr.bf16.mxu0 0
        %732 = vmatpush1.bf16.msra.mxu0 %v723
        %733 = vmatprep.subr.bf16.mxu0 0
        %734 = vmatpush1.bf16.msra.mxu0 0
        %735 = vmatprep.subr.bf16.mxu0 0
        %736 = vmatpush1.bf16.msra.mxu0 0
        %737 = vmatprep.subr.bf16.mxu0 0
        %738 = vmatpush1.bf16.msra.mxu0 0
        %739 = vmatprep.subr.bf16.mxu0 0
        %740 = vmatpush1.bf16.msra.mxu0 0
        %741 = vmatprep.subr.bf16.mxu0 0
        %742 = vmatpush1.bf16.msra.mxu0 0
        %743 = vmatprep.subr.bf16.mxu0 0
        %744 = vmatpush1.bf16.msra.mxu0 0
        %745 = vmatprep.subr.bf16.mxu0 0
        %746 = vmatpush1.bf16.msra.mxu0 0
        %747 = vmatprep.subr.bf16.mxu0 0
        %748 = vmatpush1.bf16.msra.mxu0 0
        %749 = vmatprep.subr.bf16.mxu0 0
        %750 = vmatpush1.bf16.msra.mxu0 0
        %751 = vmatprep.subr.bf16.mxu0 0
        %752 = vmatpush1.bf16.msra.mxu0 0
        %753 = vmatprep.subr.bf16.mxu0 0
        %754 = vmatpush1.bf16.msra.mxu0 0
        %755 = vmatprep.subr.bf16.mxu0 0
        %756 = vmatpush1.bf16.msra.mxu0 0
        %757 = vmatprep.subr.bf16.mxu0 0
        %758 = vmatpush1.bf16.msra.mxu0 0
        %759 = vmatprep.mubr.bf16.mxu0 0
        %760 = vmatmul.mubr.bf16.gmra.mrb[0].mxu0 %v575
        %v761 = vpop.f32.mrb[0].mxu0
        %v762 = vadd.f32 0.0, %v761
        %v763 = vpop.f32.mrb[0].mxu0
        %v764 = vpop.f32.mrb[0].mxu0
        %v765 = vadd.f32 0.0, %v764
        %v766 = vpop.f32.mrb[0].mxu0
        %767 = vmatprep.mubr.bf16.mxu0 0
        %768 = vmatmul.mubr.bf16.gmra.mrb[0].mxu0 %v578
        %v769 = vpop.f32.mrb[0].mxu0
        %v770 = vadd.f32 0.0, %v769
        %v771 = vpop.f32.mrb[0].mxu0
        %v772 = vpop.f32.mrb[0].mxu0
        %v773 = vadd.f32 0.0, %v772
        %v774 = vpop.f32.mrb[0].mxu0
        %775 = vmatprep.mubr.bf16.mxu0 0
        %776 = vmatmul.mubr.bf16.gmra.mrb[0].mxu0 %v581
        %v777 = vpop.f32.mrb[0].mxu0
        %v778 = vadd.f32 0.0, %v777
        %v779 = vpop.f32.mrb[0].mxu0
        %v780 = vpop.f32.mrb[0].mxu0
        %v781 = vadd.f32 0.0, %v780
        %v782 = vpop.f32.mrb[0].mxu0
        %783 = vmatprep.mubr.bf16.mxu0 0
        %784 = vmatmul.mubr.bf16.gmra.mrb[0].mxu0 %v584
        %v785 = vpop.f32.mrb[0].mxu0
        %v786 = vadd.f32 0.0, %v785
        %v787 = vpop.f32.mrb[0].mxu0
        %v788 = vpop.f32.mrb[0].mxu0
        %v789 = vadd.f32 0.0, %v788
        %v790 = vpop.f32.mrb[0].mxu0
        %791 = vmatprep.mubr.bf16.mxu0 0
        %792 = vmatmul.mubr.bf16.gmra.mrb[0].mxu0 %v587
        %v793 = vpop.f32.mrb[0].mxu0
        %v794 = vadd.f32 0.0, %v793
        %v795 = vpop.f32.mrb[0].mxu0
        %v796 = vpop.f32.mrb[0].mxu0
        %v797 = vadd.f32 0.0, %v796
        %v798 = vpop.f32.mrb[0].mxu0
        %799 = vmatprep.mubr.bf16.mxu0 0
        %800 = vmatmul.mubr.bf16.gmra.mrb[0].mxu0 %v590
        %v801 = vpop.f32.mrb[0].mxu0
        %v802 = vadd.f32 0.0, %v801
        %v803 = vpop.f32.mrb[0].mxu0
        %v804 = vpop.f32.mrb[0].mxu0
        %v805 = vadd.f32 0.0, %v804
        %v806 = vpop.f32.mrb[0].mxu0
        %807 = vmatprep.mubr.bf16.mxu0 0
        %808 = vmatmul.mubr.bf16.gmra.mrb[0].mxu0 %v593
        %v809 = vpop.f32.mrb[0].mxu0
        %v810 = vadd.f32 0.0, %v809
        %v811 = vpop.f32.mrb[0].mxu0
        %v812 = vpop.f32.mrb[0].mxu0
        %v813 = vadd.f32 0.0, %v812
        %v814 = vpop.f32.mrb[0].mxu0
        %815 = vmatprep.mubr.bf16.mxu0 0
        %816 = vmatmul.mubr.bf16.gmra.mrb[0].mxu0 %v596
        %v817 = vpop.f32.mrb[0].mxu0
        %v818 = vadd.f32 0.0, %v817
        %v819 = vpop.f32.mrb[0].mxu0
        %v820 = vpop.f32.mrb[0].mxu0
        %v821 = vadd.f32 0.0, %v820
        %v822 = vpop.f32.mrb[0].mxu0
        %823 = vdwg.mxu0
        %v824 = vpack.c.bf16 %v765, %v762
        %v825 = vpack.c.bf16 %v773, %v770
        %v826 = vpack.c.bf16 %v781, %v778
        %v827 = vpack.c.bf16 %v789, %v786
        %v828 = vpack.c.bf16 %v797, %v794
        %v829 = vpack.c.bf16 %v805, %v802
        %v830 = vpack.c.bf16 %v813, %v810
        %v831 = vpack.c.bf16 %v821, %v818
        %v832 = vld [vmem:[%s4] sm:$0xf]
        %v833 = vld [vmem:[%s4 + $0x4] sm:$0xf]
        %v834 = vld [vmem:[%s4 + $0x8] sm:$0xf]
        %v835 = vld [vmem:[%s4 + $0xc] sm:$0xf]
        %v840 = vunpack.c.l.b16 %v832
        %v841 = vunpack.c.l.b16 %v833
        %v842 = vunpack.c.l.b16 %v834
        %v843 = vunpack.c.l.b16 %v835
        %v844 = vpack.c.b16 %v841, %v840
        %v845 = vpack.c.b16 %v843, %v842
        %vm846 = vcmask 261120
        %v848 = vsel %vm846, %v844, 0
        %v851 = vsel %vm846, %v845, 0
        %v854 = vsel %vm846, %v695, 0
        %v857 = vsel %vm846, %v696, 0
        %859 = vmatprep.subr.bf16.mxu0 0
        %860 = vmatpush1.bf16.xpose.msra.mxu0 %v854
        %861 = vmatprep.subr.bf16.mxu0 0
        %862 = vmatpush1.bf16.xpose.msra.mxu0 %v857
        %863 = vmatprep.subr.bf16.mxu0 0
        %864 = vmatpush1.bf16.xpose.msra.mxu0 0
        %865 = vmatprep.subr.bf16.mxu0 0
        %866 = vmatpush1.bf16.xpose.msra.mxu0 0
        %867 = vmatprep.subr.bf16.mxu0 0
        %868 = vmatpush1.bf16.xpose.msra.mxu0 0
        %869 = vmatprep.subr.bf16.mxu0 0
        %870 = vmatpush1.bf16.xpose.msra.mxu0 0
        %871 = vmatprep.subr.bf16.mxu0 0
        %872 = vmatpush1.bf16.xpose.msra.mxu0 0
        %873 = vmatprep.subr.bf16.mxu0 0
        %874 = vmatpush1.bf16.xpose.msra.mxu0 0
        %875 = vmatprep.subr.bf16.mxu0 0
        %876 = vmatpush1.bf16.xpose.msra.mxu0 0
        %877 = vmatprep.subr.bf16.mxu0 0
        %878 = vmatpush1.bf16.xpose.msra.mxu0 0
        %879 = vmatprep.subr.bf16.mxu0 0
        %880 = vmatpush1.bf16.xpose.msra.mxu0 0
        %881 = vmatprep.subr.bf16.mxu0 0
        %882 = vmatpush1.bf16.xpose.msra.mxu0 0
        %883 = vmatprep.subr.bf16.mxu0 0
        %884 = vmatpush1.bf16.xpose.msra.mxu0 0
        %885 = vmatprep.subr.bf16.mxu0 0
        %886 = vmatpush1.bf16.xpose.msra.mxu0 0
        %887 = vmatprep.subr.bf16.mxu0 0
        %888 = vmatpush1.bf16.xpose.msra.mxu0 0
        %889 = vmatprep.subr.bf16.mxu0 0
        %890 = vmatpush1.bf16.xpose.msra.mxu0 0
        %891 = vmatprep.mubr.bf16.mxu0 0
        %892 = vmatmul.mubr.bf16.gmra.mrb[0].mxu0 %v848
        %v893 = vpop.f32.mrb[0].mxu0
        %v894 = vadd.f32 0.0, %v893
        %v895 = vpop.f32.mrb[0].mxu0
        %v896 = vpop.f32.mrb[0].mxu0
        %v897 = vadd.f32 0.0, %v896
        %v898 = vpop.f32.mrb[0].mxu0
        %899 = vmatprep.mubr.bf16.mxu0 0
        %900 = vmatmul.mubr.bf16.gmra.mrb[0].mxu0 %v851
        %v901 = vpop.f32.mrb[0].mxu0
        %v902 = vadd.f32 0.0, %v901
        %v903 = vpop.f32.mrb[0].mxu0
        %v904 = vpop.f32.mrb[0].mxu0
        %v905 = vadd.f32 0.0, %v904
        %v906 = vpop.f32.mrb[0].mxu0
        %907 = vdwg.mxu0
        %v909 = vsel %vm846, %v697, 0
        %v912 = vsel %vm846, %v698, 0
        %914 = vmatprep.subr.bf16.mxu0 0
        %915 = vmatpush1.bf16.xpose.msra.mxu0 %v909
        %916 = vmatprep.subr.bf16.mxu0 0
        %917 = vmatpush1.bf16.xpose.msra.mxu0 %v912
        %918 = vmatprep.subr.bf16.mxu0 0
        %919 = vmatpush1.bf16.xpose.msra.mxu0 0
        %920 = vmatprep.subr.bf16.mxu0 0
        %921 = vmatpush1.bf16.xpose.msra.mxu0 0
        %922 = vmatprep.subr.bf16.mxu0 0
        %923 = vmatpush1.bf16.xpose.msra.mxu0 0
        %924 = vmatprep.subr.bf16.mxu0 0
        %925 = vmatpush1.bf16.xpose.msra.mxu0 0
        %926 = vmatprep.subr.bf16.mxu0 0
        %927 = vmatpush1.bf16.xpose.msra.mxu0 0
        %928 = vmatprep.subr.bf16.mxu0 0
        %929 = vmatpush1.bf16.xpose.msra.mxu0 0
        %930 = vmatprep.subr.bf16.mxu0 0
        %931 = vmatpush1.bf16.xpose.msra.mxu0 0
        %932 = vmatprep.subr.bf16.mxu0 0
        %933 = vmatpush1.bf16.xpose.msra.mxu0 0
        %934 = vmatprep.subr.bf16.mxu0 0
        %935 = vmatpush1.bf16.xpose.msra.mxu0 0
        %936 = vmatprep.subr.bf16.mxu0 0
        %937 = vmatpush1.bf16.xpose.msra.mxu0 0
        %938 = vmatprep.subr.bf16.mxu0 0
        %939 = vmatpush1.bf16.xpose.msra.mxu0 0
        %940 = vmatprep.subr.bf16.mxu0 0
        %941 = vmatpush1.bf16.xpose.msra.mxu0 0
        %942 = vmatprep.subr.bf16.mxu0 0
        %943 = vmatpush1.bf16.xpose.msra.mxu0 0
        %944 = vmatprep.subr.bf16.mxu0 0
        %945 = vmatpush1.bf16.xpose.msra.mxu0 0
        %946 = vmatprep.mubr.bf16.mxu0 0
        %947 = vmatmul.mubr.bf16.gmra.mrb[0].mxu0 %v848
        %v948 = vpop.f32.mrb[0].mxu0
        %v949 = vadd.f32 0.0, %v948
        %v950 = vpop.f32.mrb[0].mxu0
        %v951 = vpop.f32.mrb[0].mxu0
        %v952 = vadd.f32 0.0, %v951
        %v953 = vpop.f32.mrb[0].mxu0
        %954 = vmatprep.mubr.bf16.mxu0 0
        %955 = vmatmul.mubr.bf16.gmra.mrb[0].mxu0 %v851
        %v956 = vpop.f32.mrb[0].mxu0
        %v957 = vadd.f32 0.0, %v956
        %v958 = vpop.f32.mrb[0].mxu0
        %v959 = vpop.f32.mrb[0].mxu0
        %v960 = vadd.f32 0.0, %v959
        %v961 = vpop.f32.mrb[0].mxu0
        %962 = vdwg.mxu0
        %v964 = vsel %vm846, %v699, 0
        %v967 = vsel %vm846, %v700, 0
        %969 = vmatprep.subr.bf16.mxu0 0
        %970 = vmatpush1.bf16.xpose.msra.mxu0 %v964
        %971 = vmatprep.subr.bf16.mxu0 0
        %972 = vmatpush1.bf16.xpose.msra.mxu0 %v967
        %973 = vmatprep.subr.bf16.mxu0 0
        %974 = vmatpush1.bf16.xpose.msra.mxu0 0
        %975 = vmatprep.subr.bf16.mxu0 0
        %976 = vmatpush1.bf16.xpose.msra.mxu0 0
        %977 = vmatprep.subr.bf16.mxu0 0
        %978 = vmatpush1.bf16.xpose.msra.mxu0 0
        %979 = vmatprep.subr.bf16.mxu0 0
        %980 = vmatpush1.bf16.xpose.msra.mxu0 0
        %981 = vmatprep.subr.bf16.mxu0 0
        %982 = vmatpush1.bf16.xpose.msra.mxu0 0
        %983 = vmatprep.subr.bf16.mxu0 0
        %984 = vmatpush1.bf16.xpose.msra.mxu0 0
        %985 = vmatprep.subr.bf16.mxu0 0
        %986 = vmatpush1.bf16.xpose.msra.mxu0 0
        %987 = vmatprep.subr.bf16.mxu0 0
        %988 = vmatpush1.bf16.xpose.msra.mxu0 0
        %989 = vmatprep.subr.bf16.mxu0 0
        %990 = vmatpush1.bf16.xpose.msra.mxu0 0
        %991 = vmatprep.subr.bf16.mxu0 0
        %992 = vmatpush1.bf16.xpose.msra.mxu0 0
        %993 = vmatprep.subr.bf16.mxu0 0
        %994 = vmatpush1.bf16.xpose.msra.mxu0 0
        %995 = vmatprep.subr.bf16.mxu0 0
        %996 = vmatpush1.bf16.xpose.msra.mxu0 0
        %997 = vmatprep.subr.bf16.mxu0 0
        %998 = vmatpush1.bf16.xpose.msra.mxu0 0
        %999 = vmatprep.subr.bf16.mxu0 0
        %1000 = vmatpush1.bf16.xpose.msra.mxu0 0
        %1001 = vmatprep.mubr.bf16.mxu0 0
        %1002 = vmatmul.mubr.bf16.gmra.mrb[0].mxu0 %v848
        %v1003 = vpop.f32.mrb[0].mxu0
        %v1004 = vadd.f32 0.0, %v1003
        %v1005 = vpop.f32.mrb[0].mxu0
        %v1006 = vpop.f32.mrb[0].mxu0
        %v1007 = vadd.f32 0.0, %v1006
        %v1008 = vpop.f32.mrb[0].mxu0
        %1009 = vmatprep.mubr.bf16.mxu0 0
        %1010 = vmatmul.mubr.bf16.gmra.mrb[0].mxu0 %v851
        %v1011 = vpop.f32.mrb[0].mxu0
        %v1012 = vadd.f32 0.0, %v1011
        %v1013 = vpop.f32.mrb[0].mxu0
        %v1014 = vpop.f32.mrb[0].mxu0
        %v1015 = vadd.f32 0.0, %v1014
        %v1016 = vpop.f32.mrb[0].mxu0
        %1017 = vdwg.mxu0
        %v1019 = vsel %vm846, %v701, 0
        %v1022 = vsel %vm846, %v702, 0
        %1024 = vmatprep.subr.bf16.mxu0 0
        %1025 = vmatpush1.bf16.xpose.msra.mxu0 %v1019
        %1026 = vmatprep.subr.bf16.mxu0 0
        %1027 = vmatpush1.bf16.xpose.msra.mxu0 %v1022
        %1028 = vmatprep.subr.bf16.mxu0 0
        %1029 = vmatpush1.bf16.xpose.msra.mxu0 0
        %1030 = vmatprep.subr.bf16.mxu0 0
        %1031 = vmatpush1.bf16.xpose.msra.mxu0 0
        %1032 = vmatprep.subr.bf16.mxu0 0
        %1033 = vmatpush1.bf16.xpose.msra.mxu0 0
        %1034 = vmatprep.subr.bf16.mxu0 0
        %1035 = vmatpush1.bf16.xpose.msra.mxu0 0
        %1036 = vmatprep.subr.bf16.mxu0 0
        %1037 = vmatpush1.bf16.xpose.msra.mxu0 0
        %1038 = vmatprep.subr.bf16.mxu0 0
        %1039 = vmatpush1.bf16.xpose.msra.mxu0 0
        %1040 = vmatprep.subr.bf16.mxu0 0
        %1041 = vmatpush1.bf16.xpose.msra.mxu0 0
        %1042 = vmatprep.subr.bf16.mxu0 0
        %1043 = vmatpush1.bf16.xpose.msra.mxu0 0
        %1044 = vmatprep.subr.bf16.mxu0 0
        %1045 = vmatpush1.bf16.xpose.msra.mxu0 0
        %1046 = vmatprep.subr.bf16.mxu0 0
        %1047 = vmatpush1.bf16.xpose.msra.mxu0 0
        %1048 = vmatprep.subr.bf16.mxu0 0
        %1049 = vmatpush1.bf16.xpose.msra.mxu0 0
        %1050 = vmatprep.subr.bf16.mxu0 0
        %1051 = vmatpush1.bf16.xpose.msra.mxu0 0
        %1052 = vmatprep.subr.bf16.mxu0 0
        %1053 = vmatpush1.bf16.xpose.msra.mxu0 0
        %1054 = vmatprep.subr.bf16.mxu0 0
        %1055 = vmatpush1.bf16.xpose.msra.mxu0 0
        %1056 = vmatprep.mubr.bf16.mxu0 0
        %1057 = vmatmul.mubr.bf16.gmra.mrb[0].mxu0 %v848
        %v1058 = vpop.f32.mrb[0].mxu0
        %v1059 = vadd.f32 0.0, %v1058
        %v1060 = vpop.f32.mrb[0].mxu0
        %v1061 = vpop.f32.mrb[0].mxu0
        %v1062 = vadd.f32 0.0, %v1061
        %v1063 = vpop.f32.mrb[0].mxu0
        %1064 = vmatprep.mubr.bf16.mxu0 0
        %1065 = vmatmul.mubr.bf16.gmra.mrb[0].mxu0 %v851
        %v1066 = vpop.f32.mrb[0].mxu0
        %v1067 = vadd.f32 0.0, %v1066
        %v1068 = vpop.f32.mrb[0].mxu0
        %v1069 = vpop.f32.mrb[0].mxu0
        %v1070 = vadd.f32 0.0, %v1069
        %v1071 = vpop.f32.mrb[0].mxu0
        %1072 = vdwg.mxu0
        %v1073 = vsel %vm846, %v894, -inf
        %1074 = vmax.xlane.f32.xlu0 %v1073
        %v1075 = vpop.xlane.xlu0 %1074
        %v1076 = vsel %vm846, %v897, -inf
        %1077 = vmax.xlane.f32.xlu0 %v1076
        %v1078 = vpop.xlane.xlu0 %1077
        %v1079 = vsel %vm846, %v902, -inf
        %1080 = vmax.xlane.f32.xlu0 %v1079
        %v1081 = vpop.xlane.xlu0 %1080
        %v1082 = vsel %vm846, %v905, -inf
        %1083 = vmax.xlane.f32.xlu0 %v1082
        %v1084 = vpop.xlane.xlu0 %1083
        %v1085 = vsel %vm846, %v949, -inf
        %1086 = vmax.xlane.f32.xlu0 %v1085
        %v1087 = vpop.xlane.xlu0 %1086
        %v1088 = vsel %vm846, %v952, -inf
        %1089 = vmax.xlane.f32.xlu0 %v1088
        %v1090 = vpop.xlane.xlu0 %1089
        %v1091 = vsel %vm846, %v957, -inf
        %1092 = vmax.xlane.f32.xlu0 %v1091
        %v1093 = vpop.xlane.xlu0 %1092
        %v1094 = vsel %vm846, %v960, -inf
        %1095 = vmax.xlane.f32.xlu0 %v1094
        %v1096 = vpop.xlane.xlu0 %1095
        %v1097 = vsel %vm846, %v1004, -inf
        %1098 = vmax.xlane.f32.xlu0 %v1097
        %v1099 = vpop.xlane.xlu0 %1098
        %v1100 = vsel %vm846, %v1007, -inf
        %1101 = vmax.xlane.f32.xlu0 %v1100
        %v1102 = vpop.xlane.xlu0 %1101
        %v1103 = vsel %vm846, %v1012, -inf
        %1104 = vmax.xlane.f32.xlu0 %v1103
        %v1105 = vpop.xlane.xlu0 %1104
        %v1106 = vsel %vm846, %v1015, -inf
        %1107 = vmax.xlane.f32.xlu0 %v1106
        %v1108 = vpop.xlane.xlu0 %1107
        %v1109 = vsel %vm846, %v1059, -inf
        %1110 = vmax.xlane.f32.xlu0 %v1109
        %v1111 = vpop.xlane.xlu0 %1110
        %v1112 = vsel %vm846, %v1062, -inf
        %1113 = vmax.xlane.f32.xlu0 %v1112
        %v1114 = vpop.xlane.xlu0 %1113
        %v1115 = vsel %vm846, %v1067, -inf
        %1116 = vmax.xlane.f32.xlu0 %v1115
        %v1117 = vpop.xlane.xlu0 %1116
        %v1118 = vsel %vm846, %v1070, -inf
        %1119 = vmax.xlane.f32.xlu0 %v1118
        %v1120 = vpop.xlane.xlu0 %1119
        %v1121 = vsub.f32 %v894, %v1075
        %v1122 = vsub.f32 %v897, %v1078
        %v1123 = vsub.f32 %v902, %v1081
        %v1124 = vsub.f32 %v905, %v1084
        %v1125 = vsub.f32 %v949, %v1087
        %v1126 = vsub.f32 %v952, %v1090
        %v1127 = vsub.f32 %v957, %v1093
        %v1128 = vsub.f32 %v960, %v1096
        %v1129 = vsub.f32 %v1004, %v1099
        %v1130 = vsub.f32 %v1007, %v1102
        %v1131 = vsub.f32 %v1012, %v1105
        %v1132 = vsub.f32 %v1015, %v1108
        %v1133 = vsub.f32 %v1059, %v1111
        %v1134 = vsub.f32 %v1062, %v1114
        %v1135 = vsub.f32 %v1067, %v1117
        %v1136 = vsub.f32 %v1070, %v1120
        %v1137 = vmul.f32 %v1121, 1.442695
        %v1138 = vpow.pop %v1137
        %v1139 = vmul.f32 %v1122, 1.442695
        %v1140 = vpow.pop %v1139
        %v1141 = vmul.f32 %v1123, 1.442695
        %v1142 = vpow.pop %v1141
        %v1143 = vmul.f32 %v1124, 1.442695
        %v1144 = vpow.pop %v1143
        %v1145 = vmul.f32 %v1125, 1.442695
        %v1146 = vpow.pop %v1145
        %v1147 = vmul.f32 %v1126, 1.442695
        %v1148 = vpow.pop %v1147
        %v1149 = vmul.f32 %v1127, 1.442695
        %v1150 = vpow.pop %v1149
        %v1151 = vmul.f32 %v1128, 1.442695
        %v1152 = vpow.pop %v1151
        %v1153 = vmul.f32 %v1129, 1.442695
        %v1154 = vpow.pop %v1153
        %v1155 = vmul.f32 %v1130, 1.442695
        %v1156 = vpow.pop %v1155
        %v1157 = vmul.f32 %v1131, 1.442695
        %v1158 = vpow.pop %v1157
        %v1159 = vmul.f32 %v1132, 1.442695
        %v1160 = vpow.pop %v1159
        %v1161 = vmul.f32 %v1133, 1.442695
        %v1162 = vpow.pop %v1161
        %v1163 = vmul.f32 %v1134, 1.442695
        %v1164 = vpow.pop %v1163
        %v1165 = vmul.f32 %v1135, 1.442695
        %v1166 = vpow.pop %v1165
        %v1167 = vmul.f32 %v1136, 1.442695
        %v1168 = vpow.pop %v1167
        %v1169 = vsel %vm846, %v1138, 0.0
        %1170 = vadd.xlane.f32.xlu0 %v1169
        %v1171 = vpop.xlane.xlu0 %1170
        %v1172 = vsel %vm846, %v1140, 0.0
        %1173 = vadd.xlane.f32.xlu0 %v1172
        %v1174 = vpop.xlane.xlu0 %1173
        %v1175 = vsel %vm846, %v1142, 0.0
        %1176 = vadd.xlane.f32.xlu0 %v1175
        %v1177 = vpop.xlane.xlu0 %1176
        %v1178 = vsel %vm846, %v1144, 0.0
        %1179 = vadd.xlane.f32.xlu0 %v1178
        %v1180 = vpop.xlane.xlu0 %1179
        %v1181 = vsel %vm846, %v1146, 0.0
        %1182 = vadd.xlane.f32.xlu0 %v1181
        %v1183 = vpop.xlane.xlu0 %1182
        %v1184 = vsel %vm846, %v1148, 0.0
        %1185 = vadd.xlane.f32.xlu0 %v1184
        %v1186 = vpop.xlane.xlu0 %1185
        %v1187 = vsel %vm846, %v1150, 0.0
        %1188 = vadd.xlane.f32.xlu0 %v1187
        %v1189 = vpop.xlane.xlu0 %1188
        %v1190 = vsel %vm846, %v1152, 0.0
        %1191 = vadd.xlane.f32.xlu0 %v1190
        %v1192 = vpop.xlane.xlu0 %1191
        %v1193 = vsel %vm846, %v1154, 0.0
        %1194 = vadd.xlane.f32.xlu0 %v1193
        %v1195 = vpop.xlane.xlu0 %1194
        %v1196 = vsel %vm846, %v1156, 0.0
        %1197 = vadd.xlane.f32.xlu0 %v1196
        %v1198 = vpop.xlane.xlu0 %1197
        %v1199 = vsel %vm846, %v1158, 0.0
        %1200 = vadd.xlane.f32.xlu0 %v1199
        %v1201 = vpop.xlane.xlu0 %1200
        %v1202 = vsel %vm846, %v1160, 0.0
        %1203 = vadd.xlane.f32.xlu0 %v1202
        %v1204 = vpop.xlane.xlu0 %1203
        %v1205 = vsel %vm846, %v1162, 0.0
        %1206 = vadd.xlane.f32.xlu0 %v1205
        %v1207 = vpop.xlane.xlu0 %1206
        %v1208 = vsel %vm846, %v1164, 0.0
        %1209 = vadd.xlane.f32.xlu0 %v1208
        %v1210 = vpop.xlane.xlu0 %1209
        %v1211 = vsel %vm846, %v1166, 0.0
        %1212 = vadd.xlane.f32.xlu0 %v1211
        %v1213 = vpop.xlane.xlu0 %1212
        %v1214 = vsel %vm846, %v1168, 0.0
        %1215 = vadd.xlane.f32.xlu0 %v1214
        %v1216 = vpop.xlane.xlu0 %1215
        %v1217 = vrcp.pop %v1171
        %v1218 = vrcp.pop %v1174
        %v1219 = vrcp.pop %v1177
        %v1220 = vrcp.pop %v1180
        %v1221 = vrcp.pop %v1183
        %v1222 = vrcp.pop %v1186
        %v1223 = vrcp.pop %v1189
        %v1224 = vrcp.pop %v1192
        %v1225 = vrcp.pop %v1195
        %v1226 = vrcp.pop %v1198
        %v1227 = vrcp.pop %v1201
        %v1228 = vrcp.pop %v1204
        %v1229 = vrcp.pop %v1207
        %v1230 = vrcp.pop %v1210
        %v1231 = vrcp.pop %v1213
        %v1232 = vrcp.pop %v1216
        %v1233 = vmul.f32 %v1138, %v1217
        %v1234 = vmul.f32 %v1140, %v1218
        %v1235 = vmul.f32 %v1142, %v1219
        %v1236 = vmul.f32 %v1144, %v1220
        %v1237 = vmul.f32 %v1146, %v1221
        %v1238 = vmul.f32 %v1148, %v1222
        %v1239 = vmul.f32 %v1150, %v1223
        %v1240 = vmul.f32 %v1152, %v1224
        %v1241 = vmul.f32 %v1154, %v1225
        %v1242 = vmul.f32 %v1156, %v1226
        %v1243 = vmul.f32 %v1158, %v1227
        %v1244 = vmul.f32 %v1160, %v1228
        %v1245 = vmul.f32 %v1162, %v1229
        %v1246 = vmul.f32 %v1164, %v1230
        %v1247 = vmul.f32 %v1166, %v1231
        %v1248 = vmul.f32 %v1168, %v1232
        %v1249 = vpack.c.bf16 %v1234, %v1233
        %v1250 = vpack.c.bf16 %v1236, %v1235
        %v1251 = vpack.c.bf16 %v1238, %v1237
        %v1252 = vpack.c.bf16 %v1240, %v1239
        %v1253 = vpack.c.bf16 %v1242, %v1241
        %v1254 = vpack.c.bf16 %v1244, %v1243
        %v1255 = vpack.c.bf16 %v1246, %v1245
        %v1256 = vpack.c.bf16 %v1248, %v1247
        %v1258 = vrot.slane %v1249, 4
        %1261 = vrot.lane.b32.xlu0 %v824, 96
        %v1262 = vpop.permute.xlu0 %1261
        %1263 = vrot.lane.b32.xlu0 %v825, 96
        %v1264 = vpop.permute.xlu0 %1263
        %v1268 = vsel %vm846, %v1258, 0
        %1270 = vmatprep.subr.bf16.mxu0 0
        %1271 = vmatpush1.bf16.msra.mxu0 %v1262
        %1272 = vmatprep.subr.bf16.mxu0 0
        %1273 = vmatpush1.bf16.msra.mxu0 %v1264
        %1274 = vmatprep.subr.bf16.mxu0 0
        %1275 = vmatpush1.bf16.msra.mxu0 0
        %1276 = vmatprep.subr.bf16.mxu0 0
        %1277 = vmatpush1.bf16.msra.mxu0 0
        %1278 = vmatprep.subr.bf16.mxu0 0
        %1279 = vmatpush1.bf16.msra.mxu0 0
        %1280 = vmatprep.subr.bf16.mxu0 0
        %1281 = vmatpush1.bf16.msra.mxu0 0
        %1282 = vmatprep.subr.bf16.mxu0 0
        %1283 = vmatpush1.bf16.msra.mxu0 0
        %1284 = vmatprep.subr.bf16.mxu0 0
        %1285 = vmatpush1.bf16.msra.mxu0 0
        %1286 = vmatprep.subr.bf16.mxu0 0
        %1287 = vmatpush1.bf16.msra.mxu0 0
        %1288 = vmatprep.subr.bf16.mxu0 0
        %1289 = vmatpush1.bf16.msra.mxu0 0
        %1290 = vmatprep.subr.bf16.mxu0 0
        %1291 = vmatpush1.bf16.msra.mxu0 0
        %1292 = vmatprep.subr.bf16.mxu0 0
        %1293 = vmatpush1.bf16.msra.mxu0 0
        %1294 = vmatprep.subr.bf16.mxu0 0
        %1295 = vmatpush1.bf16.msra.mxu0 0
        %1296 = vmatprep.subr.bf16.mxu0 0
        %1297 = vmatpush1.bf16.msra.mxu0 0
        %1298 = vmatprep.subr.bf16.mxu0 0
        %1299 = vmatpush1.bf16.msra.mxu0 0
        %1300 = vmatprep.subr.bf16.mxu0 0
        %1301 = vmatpush1.bf16.msra.mxu0 0
        %1302 = vmatprep.mubr.bf16.mxu0 0
        %1303 = vmatmul.mubr.bf16.gmra.mrb[0].mxu0 %v1268
        %v1304 = vpop.f32.mrb[0].mxu0
        %v1305 = vadd.f32 0.0, %v1304
        %v1306 = vpop.f32.mrb[0].mxu0
        %v1307 = vpop.f32.mrb[0].mxu0
        %v1308 = vpop.f32.mrb[0].mxu0
        %1309 = vdwg.mxu0
        %v1311 = vrot.slane %v1251, 4
        %1314 = vrot.lane.b32.xlu0 %v826, 96
        %v1315 = vpop.permute.xlu0 %1314
        %1316 = vrot.lane.b32.xlu0 %v827, 96
        %v1317 = vpop.permute.xlu0 %1316
        %v1321 = vsel %vm846, %v1311, 0
        %1323 = vmatprep.subr.bf16.mxu0 0
        %1324 = vmatpush1.bf16.msra.mxu0 %v1315
        %1325 = vmatprep.subr.bf16.mxu0 0
        %1326 = vmatpush1.bf16.msra.mxu0 %v1317
        %1327 = vmatprep.subr.bf16.mxu0 0
        %1328 = vmatpush1.bf16.msra.mxu0 0
        %1329 = vmatprep.subr.bf16.mxu0 0
        %1330 = vmatpush1.bf16.msra.mxu0 0
        %1331 = vmatprep.subr.bf16.mxu0 0
        %1332 = vmatpush1.bf16.msra.mxu0 0
        %1333 = vmatprep.subr.bf16.mxu0 0
        %1334 = vmatpush1.bf16.msra.mxu0 0
        %1335 = vmatprep.subr.bf16.mxu0 0
        %1336 = vmatpush1.bf16.msra.mxu0 0
        %1337 = vmatprep.subr.bf16.mxu0 0
        %1338 = vmatpush1.bf16.msra.mxu0 0
        %1339 = vmatprep.subr.bf16.mxu0 0
        %1340 = vmatpush1.bf16.msra.mxu0 0
        %1341 = vmatprep.subr.bf16.mxu0 0
        %1342 = vmatpush1.bf16.msra.mxu0 0
        %1343 = vmatprep.subr.bf16.mxu0 0
        %1344 = vmatpush1.bf16.msra.mxu0 0
        %1345 = vmatprep.subr.bf16.mxu0 0
        %1346 = vmatpush1.bf16.msra.mxu0 0
        %1347 = vmatprep.subr.bf16.mxu0 0
        %1348 = vmatpush1.bf16.msra.mxu0 0
        %1349 = vmatprep.subr.bf16.mxu0 0
        %1350 = vmatpush1.bf16.msra.mxu0 0
        %1351 = vmatprep.subr.bf16.mxu0 0
        %1352 = vmatpush1.bf16.msra.mxu0 0
        %1353 = vmatprep.subr.bf16.mxu0 0
        %1354 = vmatpush1.bf16.msra.mxu0 0
        %1355 = vmatprep.mubr.bf16.mxu0 0
        %1356 = vmatmul.mubr.bf16.gmra.mrb[0].mxu0 %v1321
        %v1357 = vpop.f32.mrb[0].mxu0
        %v1358 = vadd.f32 0.0, %v1357
        %v1359 = vpop.f32.mrb[0].mxu0
        %v1360 = vpop.f32.mrb[0].mxu0
        %v1361 = vpop.f32.mrb[0].mxu0
        %1362 = vdwg.mxu0
        %v1364 = vrot.slane %v1253, 4
        %1367 = vrot.lane.b32.xlu0 %v828, 96
        %v1368 = vpop.permute.xlu0 %1367
        %1369 = vrot.lane.b32.xlu0 %v829, 96
        %v1370 = vpop.permute.xlu0 %1369
        %v1374 = vsel %vm846, %v1364, 0
        %1376 = vmatprep.subr.bf16.mxu0 0
        %1377 = vmatpush1.bf16.msra.mxu0 %v1368
        %1378 = vmatprep.subr.bf16.mxu0 0
        %1379 = vmatpush1.bf16.msra.mxu0 %v1370
        %1380 = vmatprep.subr.bf16.mxu0 0
        %1381 = vmatpush1.bf16.msra.mxu0 0
        %1382 = vmatprep.subr.bf16.mxu0 0
        %1383 = vmatpush1.bf16.msra.mxu0 0
        %1384 = vmatprep.subr.bf16.mxu0 0
        %1385 = vmatpush1.bf16.msra.mxu0 0
        %1386 = vmatprep.subr.bf16.mxu0 0
        %1387 = vmatpush1.bf16.msra.mxu0 0
        %1388 = vmatprep.subr.bf16.mxu0 0
        %1389 = vmatpush1.bf16.msra.mxu0 0
        %1390 = vmatprep.subr.bf16.mxu0 0
        %1391 = vmatpush1.bf16.msra.mxu0 0
        %1392 = vmatprep.subr.bf16.mxu0 0
        %1393 = vmatpush1.bf16.msra.mxu0 0
        %1394 = vmatprep.subr.bf16.mxu0 0
        %1395 = vmatpush1.bf16.msra.mxu0 0
        %1396 = vmatprep.subr.bf16.mxu0 0
        %1397 = vmatpush1.bf16.msra.mxu0 0
        %1398 = vmatprep.subr.bf16.mxu0 0
        %1399 = vmatpush1.bf16.msra.mxu0 0
        %1400 = vmatprep.subr.bf16.mxu0 0
        %1401 = vmatpush1.bf16.msra.mxu0 0
        %1402 = vmatprep.subr.bf16.mxu0 0
        %1403 = vmatpush1.bf16.msra.mxu0 0
        %1404 = vmatprep.subr.bf16.mxu0 0
        %1405 = vmatpush1.bf16.msra.mxu0 0
        %1406 = vmatprep.subr.bf16.mxu0 0
        %1407 = vmatpush1.bf16.msra.mxu0 0
        %1408 = vmatprep.mubr.bf16.mxu0 0
        %1409 = vmatmul.mubr.bf16.gmra.mrb[0].mxu0 %v1374
        %v1410 = vpop.f32.mrb[0].mxu0
        %v1411 = vadd.f32 0.0, %v1410
        %v1412 = vpop.f32.mrb[0].mxu0
        %v1413 = vpop.f32.mrb[0].mxu0
        %v1414 = vpop.f32.mrb[0].mxu0
        %1415 = vdwg.mxu0
        %v1417 = vrot.slane %v1255, 4
        %1420 = vrot.lane.b32.xlu0 %v830, 96
        %v1421 = vpop.permute.xlu0 %1420
        %1422 = vrot.lane.b32.xlu0 %v831, 96
        %v1423 = vpop.permute.xlu0 %1422
        %v1427 = vsel %vm846, %v1417, 0
        %1429 = vmatprep.subr.bf16.mxu0 0
        %1430 = vmatpush1.bf16.msra.mxu0 %v1421
        %1431 = vmatprep.subr.bf16.mxu0 0
        %1432 = vmatpush1.bf16.msra.mxu0 %v1423
        %1433 = vmatprep.subr.bf16.mxu0 0
        %1434 = vmatpush1.bf16.msra.mxu0 0
        %1435 = vmatprep.subr.bf16.mxu0 0
        %1436 = vmatpush1.bf16.msra.mxu0 0
        %1437 = vmatprep.subr.bf16.mxu0 0
        %1438 = vmatpush1.bf16.msra.mxu0 0
        %1439 = vmatprep.subr.bf16.mxu0 0
        %1440 = vmatpush1.bf16.msra.mxu0 0
        %1441 = vmatprep.subr.bf16.mxu0 0
        %1442 = vmatpush1.bf16.msra.mxu0 0
        %1443 = vmatprep.subr.bf16.mxu0 0
        %1444 = vmatpush1.bf16.msra.mxu0 0
        %1445 = vmatprep.subr.bf16.mxu0 0
        %1446 = vmatpush1.bf16.msra.mxu0 0
        %1447 = vmatprep.subr.bf16.mxu0 0
        %1448 = vmatpush1.bf16.msra.mxu0 0
        %1449 = vmatprep.subr.bf16.mxu0 0
        %1450 = vmatpush1.bf16.msra.mxu0 0
        %1451 = vmatprep.subr.bf16.mxu0 0
        %1452 = vmatpush1.bf16.msra.mxu0 0
        %1453 = vmatprep.subr.bf16.mxu0 0
        %1454 = vmatpush1.bf16.msra.mxu0 0
        %1455 = vmatprep.subr.bf16.mxu0 0
        %1456 = vmatpush1.bf16.msra.mxu0 0
        %1457 = vmatprep.subr.bf16.mxu0 0
        %1458 = vmatpush1.bf16.msra.mxu0 0
        %1459 = vmatprep.subr.bf16.mxu0 0
        %1460 = vmatpush1.bf16.msra.mxu0 0
        %1461 = vmatprep.mubr.bf16.mxu0 0
        %1462 = vmatmul.mubr.bf16.gmra.mrb[0].mxu0 %v1427
        %v1463 = vpop.f32.mrb[0].mxu0
        %v1464 = vadd.f32 0.0, %v1463
        %v1465 = vpop.f32.mrb[0].mxu0
        %v1466 = vpop.f32.mrb[0].mxu0
        %v1467 = vpop.f32.mrb[0].mxu0
        %1468 = vdwg.mxu0
        %v1470 = vsel %vm846, %v1249, 0
        %1472 = vmatprep.subr.bf16.mxu0 0
        %1473 = vmatpush1.bf16.msra.mxu0 %v824
        %1474 = vmatprep.subr.bf16.mxu0 0
        %1475 = vmatpush1.bf16.msra.mxu0 %v825
        %1476 = vmatprep.subr.bf16.mxu0 0
        %1477 = vmatpush1.bf16.msra.mxu0 0
        %1478 = vmatprep.subr.bf16.mxu0 0
        %1479 = vmatpush1.bf16.msra.mxu0 0
        %1480 = vmatprep.subr.bf16.mxu0 0
        %1481 = vmatpush1.bf16.msra.mxu0 0
        %1482 = vmatprep.subr.bf16.mxu0 0
        %1483 = vmatpush1.bf16.msra.mxu0 0
        %1484 = vmatprep.subr.bf16.mxu0 0
        %1485 = vmatpush1.bf16.msra.mxu0 0
        %1486 = vmatprep.subr.bf16.mxu0 0
        %1487 = vmatpush1.bf16.msra.mxu0 0
        %1488 = vmatprep.subr.bf16.mxu0 0
        %1489 = vmatpush1.bf16.msra.mxu0 0
        %1490 = vmatprep.subr.bf16.mxu0 0
        %1491 = vmatpush1.bf16.msra.mxu0 0
        %1492 = vmatprep.subr.bf16.mxu0 0
        %1493 = vmatpush1.bf16.msra.mxu0 0
        %1494 = vmatprep.subr.bf16.mxu0 0
        %1495 = vmatpush1.bf16.msra.mxu0 0
        %1496 = vmatprep.subr.bf16.mxu0 0
        %1497 = vmatpush1.bf16.msra.mxu0 0
        %1498 = vmatprep.subr.bf16.mxu0 0
        %1499 = vmatpush1.bf16.msra.mxu0 0
        %1500 = vmatprep.subr.bf16.mxu0 0
        %1501 = vmatpush1.bf16.msra.mxu0 0
        %1502 = vmatprep.subr.bf16.mxu0 0
        %1503 = vmatpush1.bf16.msra.mxu0 0
        %1504 = vmatprep.mubr.bf16.mxu0 0
        %1505 = vmatmul.mubr.bf16.gmra.mrb[0].mxu0 %v1470
        %v1506 = vpop.f32.mrb[0].mxu0
        %v1507 = vadd.f32 %v1305, %v1506
        %v1508 = vpop.f32.mrb[0].mxu0
        %v1509 = vpop.f32.mrb[0].mxu0
        %v1510 = vpop.f32.mrb[0].mxu0
        %1511 = vdwg.mxu0
        %v1513 = vsel %vm846, %v1251, 0
        %1515 = vmatprep.subr.bf16.mxu0 0
        %1516 = vmatpush1.bf16.msra.mxu0 %v826
        %1517 = vmatprep.subr.bf16.mxu0 0
        %1518 = vmatpush1.bf16.msra.mxu0 %v827
        %1519 = vmatprep.subr.bf16.mxu0 0
        %1520 = vmatpush1.bf16.msra.mxu0 0
        %1521 = vmatprep.subr.bf16.mxu0 0
        %1522 = vmatpush1.bf16.msra.mxu0 0
        %1523 = vmatprep.subr.bf16.mxu0 0
        %1524 = vmatpush1.bf16.msra.mxu0 0
        %1525 = vmatprep.subr.bf16.mxu0 0
        %1526 = vmatpush1.bf16.msra.mxu0 0
        %1527 = vmatprep.subr.bf16.mxu0 0
        %1528 = vmatpush1.bf16.msra.mxu0 0
        %1529 = vmatprep.subr.bf16.mxu0 0
        %1530 = vmatpush1.bf16.msra.mxu0 0
        %1531 = vmatprep.subr.bf16.mxu0 0
        %1532 = vmatpush1.bf16.msra.mxu0 0
        %1533 = vmatprep.subr.bf16.mxu0 0
        %1534 = vmatpush1.bf16.msra.mxu0 0
        %1535 = vmatprep.subr.bf16.mxu0 0
        %1536 = vmatpush1.bf16.msra.mxu0 0
        %1537 = vmatprep.subr.bf16.mxu0 0
        %1538 = vmatpush1.bf16.msra.mxu0 0
        %1539 = vmatprep.subr.bf16.mxu0 0
        %1540 = vmatpush1.bf16.msra.mxu0 0
        %1541 = vmatprep.subr.bf16.mxu0 0
        %1542 = vmatpush1.bf16.msra.mxu0 0
        %1543 = vmatprep.subr.bf16.mxu0 0
        %1544 = vmatpush1.bf16.msra.mxu0 0
        %1545 = vmatprep.subr.bf16.mxu0 0
        %1546 = vmatpush1.bf16.msra.mxu0 0
        %1547 = vmatprep.mubr.bf16.mxu0 0
        %1548 = vmatmul.mubr.bf16.gmra.mrb[0].mxu0 %v1513
        %v1549 = vpop.f32.mrb[0].mxu0
        %v1550 = vadd.f32 %v1358, %v1549
        %v1551 = vpop.f32.mrb[0].mxu0
        %v1552 = vpop.f32.mrb[0].mxu0
        %v1553 = vpop.f32.mrb[0].mxu0
        %1554 = vdwg.mxu0
        %v1556 = vsel %vm846, %v1253, 0
        %1558 = vmatprep.subr.bf16.mxu0 0
        %1559 = vmatpush1.bf16.msra.mxu0 %v828
        %1560 = vmatprep.subr.bf16.mxu0 0
        %1561 = vmatpush1.bf16.msra.mxu0 %v829
        %1562 = vmatprep.subr.bf16.mxu0 0
        %1563 = vmatpush1.bf16.msra.mxu0 0
        %1564 = vmatprep.subr.bf16.mxu0 0
        %1565 = vmatpush1.bf16.msra.mxu0 0
        %1566 = vmatprep.subr.bf16.mxu0 0
        %1567 = vmatpush1.bf16.msra.mxu0 0
        %1568 = vmatprep.subr.bf16.mxu0 0
        %1569 = vmatpush1.bf16.msra.mxu0 0
        %1570 = vmatprep.subr.bf16.mxu0 0
        %1571 = vmatpush1.bf16.msra.mxu0 0
        %1572 = vmatprep.subr.bf16.mxu0 0
        %1573 = vmatpush1.bf16.msra.mxu0 0
        %1574 = vmatprep.subr.bf16.mxu0 0
        %1575 = vmatpush1.bf16.msra.mxu0 0
        %1576 = vmatprep.subr.bf16.mxu0 0
        %1577 = vmatpush1.bf16.msra.mxu0 0
        %1578 = vmatprep.subr.bf16.mxu0 0
        %1579 = vmatpush1.bf16.msra.mxu0 0
        %1580 = vmatprep.subr.bf16.mxu0 0
        %1581 = vmatpush1.bf16.msra.mxu0 0
        %1582 = vmatprep.subr.bf16.mxu0 0
        %1583 = vmatpush1.bf16.msra.mxu0 0
        %1584 = vmatprep.subr.bf16.mxu0 0
        %1585 = vmatpush1.bf16.msra.mxu0 0
        %1586 = vmatprep.subr.bf16.mxu0 0
        %1587 = vmatpush1.bf16.msra.mxu0 0
        %1588 = vmatprep.subr.bf16.mxu0 0
        %1589 = vmatpush1.bf16.msra.mxu0 0
        %1590 = vmatprep.mubr.bf16.mxu0 0
        %1591 = vmatmul.mubr.bf16.gmra.mrb[0].mxu0 %v1556
        %v1592 = vpop.f32.mrb[0].mxu0
        %v1593 = vadd.f32 %v1411, %v1592
        %v1594 = vpop.f32.mrb[0].mxu0
        %v1595 = vpop.f32.mrb[0].mxu0
        %v1596 = vpop.f32.mrb[0].mxu0
        %1597 = vdwg.mxu0
        %v1599 = vsel %vm846, %v1255, 0
        %1601 = vmatprep.subr.bf16.mxu0 0
        %1602 = vmatpush1.bf16.msra.mxu0 %v830
        %1603 = vmatprep.subr.bf16.mxu0 0
        %1604 = vmatpush1.bf16.msra.mxu0 %v831
        %1605 = vmatprep.subr.bf16.mxu0 0
        %1606 = vmatpush1.bf16.msra.mxu0 0
        %1607 = vmatprep.subr.bf16.mxu0 0
        %1608 = vmatpush1.bf16.msra.mxu0 0
        %1609 = vmatprep.subr.bf16.mxu0 0
        %1610 = vmatpush1.bf16.msra.mxu0 0
        %1611 = vmatprep.subr.bf16.mxu0 0
        %1612 = vmatpush1.bf16.msra.mxu0 0
        %1613 = vmatprep.subr.bf16.mxu0 0
        %1614 = vmatpush1.bf16.msra.mxu0 0
        %1615 = vmatprep.subr.bf16.mxu0 0
        %1616 = vmatpush1.bf16.msra.mxu0 0
        %1617 = vmatprep.subr.bf16.mxu0 0
        %1618 = vmatpush1.bf16.msra.mxu0 0
        %1619 = vmatprep.subr.bf16.mxu0 0
        %1620 = vmatpush1.bf16.msra.mxu0 0
        %1621 = vmatprep.subr.bf16.mxu0 0
        %1622 = vmatpush1.bf16.msra.mxu0 0
        %1623 = vmatprep.subr.bf16.mxu0 0
        %1624 = vmatpush1.bf16.msra.mxu0 0
        %1625 = vmatprep.subr.bf16.mxu0 0
        %1626 = vmatpush1.bf16.msra.mxu0 0
        %1627 = vmatprep.subr.bf16.mxu0 0
        %1628 = vmatpush1.bf16.msra.mxu0 0
        %1629 = vmatprep.subr.bf16.mxu0 0
        %1630 = vmatpush1.bf16.msra.mxu0 0
        %1631 = vmatprep.subr.bf16.mxu0 0
        %1632 = vmatpush1.bf16.msra.mxu0 0
        %1633 = vmatprep.mubr.bf16.mxu0 0
        %1634 = vmatmul.mubr.bf16.gmra.mrb[0].mxu0 %v1599
        %v1635 = vpop.f32.mrb[0].mxu0
        %v1636 = vadd.f32 %v1464, %v1635
        %v1637 = vpop.f32.mrb[0].mxu0
        %v1638 = vpop.f32.mrb[0].mxu0
        %v1639 = vpop.f32.mrb[0].mxu0
        %1640 = vdwg.mxu0
        %1641 = vrot.lane.b32.xlu0 %v824, 64
        %v1642 = vpop.permute.xlu0 %1641
        %1643 = vrot.lane.b32.xlu0 %v825, 64
        %v1644 = vpop.permute.xlu0 %1643
        %v1648 = vsel %vm846, %v1250, 0
        %1650 = vmatprep.subr.bf16.mxu0 0
        %1651 = vmatpush1.bf16.msra.mxu0 %v1642
        %1652 = vmatprep.subr.bf16.mxu0 0
        %1653 = vmatpush1.bf16.msra.mxu0 %v1644
        %1654 = vmatprep.subr.bf16.mxu0 0
        %1655 = vmatpush1.bf16.msra.mxu0 0
        %1656 = vmatprep.subr.bf16.mxu0 0
        %1657 = vmatpush1.bf16.msra.mxu0 0
        %1658 = vmatprep.subr.bf16.mxu0 0
        %1659 = vmatpush1.bf16.msra.mxu0 0
        %1660 = vmatprep.subr.bf16.mxu0 0
        %1661 = vmatpush1.bf16.msra.mxu0 0
        %1662 = vmatprep.subr.bf16.mxu0 0
        %1663 = vmatpush1.bf16.msra.mxu0 0
        %1664 = vmatprep.subr.bf16.mxu0 0
        %1665 = vmatpush1.bf16.msra.mxu0 0
        %1666 = vmatprep.subr.bf16.mxu0 0
        %1667 = vmatpush1.bf16.msra.mxu0 0
        %1668 = vmatprep.subr.bf16.mxu0 0
        %1669 = vmatpush1.bf16.msra.mxu0 0
        %1670 = vmatprep.subr.bf16.mxu0 0
        %1671 = vmatpush1.bf16.msra.mxu0 0
        %1672 = vmatprep.subr.bf16.mxu0 0
        %1673 = vmatpush1.bf16.msra.mxu0 0
        %1674 = vmatprep.subr.bf16.mxu0 0
        %1675 = vmatpush1.bf16.msra.mxu0 0
        %1676 = vmatprep.subr.bf16.mxu0 0
        %1677 = vmatpush1.bf16.msra.mxu0 0
        %1678 = vmatprep.subr.bf16.mxu0 0
        %1679 = vmatpush1.bf16.msra.mxu0 0
        %1680 = vmatprep.subr.bf16.mxu0 0
        %1681 = vmatpush1.bf16.msra.mxu0 0
        %1682 = vmatprep.mubr.bf16.mxu0 0
        %1683 = vmatmul.mubr.bf16.gmra.mrb[0].mxu0 %v1648
        %v1684 = vpop.f32.mrb[0].mxu0
        %v1685 = vadd.f32 0.0, %v1684
        %v1686 = vpop.f32.mrb[0].mxu0
        %v1687 = vpop.f32.mrb[0].mxu0
        %v1688 = vpop.f32.mrb[0].mxu0
        %1689 = vdwg.mxu0
        %1690 = vrot.lane.b32.xlu0 %v826, 64
        %v1691 = vpop.permute.xlu0 %1690
        %1692 = vrot.lane.b32.xlu0 %v827, 64
        %v1693 = vpop.permute.xlu0 %1692
        %v1697 = vsel %vm846, %v1252, 0
        %1699 = vmatprep.subr.bf16.mxu0 0
        %1700 = vmatpush1.bf16.msra.mxu0 %v1691
        %1701 = vmatprep.subr.bf16.mxu0 0
        %1702 = vmatpush1.bf16.msra.mxu0 %v1693
        %1703 = vmatprep.subr.bf16.mxu0 0
        %1704 = vmatpush1.bf16.msra.mxu0 0
        %1705 = vmatprep.subr.bf16.mxu0 0
        %1706 = vmatpush1.bf16.msra.mxu0 0
        %1707 = vmatprep.subr.bf16.mxu0 0
        %1708 = vmatpush1.bf16.msra.mxu0 0
        %1709 = vmatprep.subr.bf16.mxu0 0
        %1710 = vmatpush1.bf16.msra.mxu0 0
        %1711 = vmatprep.subr.bf16.mxu0 0
        %1712 = vmatpush1.bf16.msra.mxu0 0
        %1713 = vmatprep.subr.bf16.mxu0 0
        %1714 = vmatpush1.bf16.msra.mxu0 0
        %1715 = vmatprep.subr.bf16.mxu0 0
        %1716 = vmatpush1.bf16.msra.mxu0 0
        %1717 = vmatprep.subr.bf16.mxu0 0
        %1718 = vmatpush1.bf16.msra.mxu0 0
        %1719 = vmatprep.subr.bf16.mxu0 0
        %1720 = vmatpush1.bf16.msra.mxu0 0
        %1721 = vmatprep.subr.bf16.mxu0 0
        %1722 = vmatpush1.bf16.msra.mxu0 0
        %1723 = vmatprep.subr.bf16.mxu0 0
        %1724 = vmatpush1.bf16.msra.mxu0 0
        %1725 = vmatprep.subr.bf16.mxu0 0
        %1726 = vmatpush1.bf16.msra.mxu0 0
        %1727 = vmatprep.subr.bf16.mxu0 0
        %1728 = vmatpush1.bf16.msra.mxu0 0
        %1729 = vmatprep.subr.bf16.mxu0 0
        %1730 = vmatpush1.bf16.msra.mxu0 0
        %1731 = vmatprep.mubr.bf16.mxu0 0
        %1732 = vmatmul.mubr.bf16.gmra.mrb[0].mxu0 %v1697
        %v1733 = vpop.f32.mrb[0].mxu0
        %v1734 = vadd.f32 0.0, %v1733
        %v1735 = vpop.f32.mrb[0].mxu0
        %v1736 = vpop.f32.mrb[0].mxu0
        %v1737 = vpop.f32.mrb[0].mxu0
        %1738 = vdwg.mxu0
        %1739 = vrot.lane.b32.xlu0 %v828, 64
        %v1740 = vpop.permute.xlu0 %1739
        %1741 = vrot.lane.b32.xlu0 %v829, 64
        %v1742 = vpop.permute.xlu0 %1741
        %v1746 = vsel %vm846, %v1254, 0
        %1748 = vmatprep.subr.bf16.mxu0 0
        %1749 = vmatpush1.bf16.msra.mxu0 %v1740
        %1750 = vmatprep.subr.bf16.mxu0 0
        %1751 = vmatpush1.bf16.msra.mxu0 %v1742
        %1752 = vmatprep.subr.bf16.mxu0 0
        %1753 = vmatpush1.bf16.msra.mxu0 0
        %1754 = vmatprep.subr.bf16.mxu0 0
        %1755 = vmatpush1.bf16.msra.mxu0 0
        %1756 = vmatprep.subr.bf16.mxu0 0
        %1757 = vmatpush1.bf16.msra.mxu0 0
        %1758 = vmatprep.subr.bf16.mxu0 0
        %1759 = vmatpush1.bf16.msra.mxu0 0
        %1760 = vmatprep.subr.bf16.mxu0 0
        %1761 = vmatpush1.bf16.msra.mxu0 0
        %1762 = vmatprep.subr.bf16.mxu0 0
        %1763 = vmatpush1.bf16.msra.mxu0 0
        %1764 = vmatprep.subr.bf16.mxu0 0
        %1765 = vmatpush1.bf16.msra.mxu0 0
        %1766 = vmatprep.subr.bf16.mxu0 0
        %1767 = vmatpush1.bf16.msra.mxu0 0
        %1768 = vmatprep.subr.bf16.mxu0 0
        %1769 = vmatpush1.bf16.msra.mxu0 0
        %1770 = vmatprep.subr.bf16.mxu0 0
        %1771 = vmatpush1.bf16.msra.mxu0 0
        %1772 = vmatprep.subr.bf16.mxu0 0
        %1773 = vmatpush1.bf16.msra.mxu0 0
        %1774 = vmatprep.subr.bf16.mxu0 0
        %1775 = vmatpush1.bf16.msra.mxu0 0
        %1776 = vmatprep.subr.bf16.mxu0 0
        %1777 = vmatpush1.bf16.msra.mxu0 0
        %1778 = vmatprep.subr.bf16.mxu0 0
        %1779 = vmatpush1.bf16.msra.mxu0 0
        %1780 = vmatprep.mubr.bf16.mxu0 0
        %1781 = vmatmul.mubr.bf16.gmra.mrb[0].mxu0 %v1746
        %v1782 = vpop.f32.mrb[0].mxu0
        %v1783 = vadd.f32 0.0, %v1782
        %v1784 = vpop.f32.mrb[0].mxu0
        %v1785 = vpop.f32.mrb[0].mxu0
        %v1786 = vpop.f32.mrb[0].mxu0
        %1787 = vdwg.mxu0
        %1788 = vrot.lane.b32.xlu0 %v830, 64
        %v1789 = vpop.permute.xlu0 %1788
        %1790 = vrot.lane.b32.xlu0 %v831, 64
        %v1791 = vpop.permute.xlu0 %1790
        %v1795 = vsel %vm846, %v1256, 0
        %1797 = vmatprep.subr.bf16.mxu0 0
        %1798 = vmatpush1.bf16.msra.mxu0 %v1789
        %1799 = vmatprep.subr.bf16.mxu0 0
        %1800 = vmatpush1.bf16.msra.mxu0 %v1791
        %1801 = vmatprep.subr.bf16.mxu0 0
        %1802 = vmatpush1.bf16.msra.mxu0 0
        %1803 = vmatprep.subr.bf16.mxu0 0
        %1804 = vmatpush1.bf16.msra.mxu0 0
        %1805 = vmatprep.subr.bf16.mxu0 0
        %1806 = vmatpush1.bf16.msra.mxu0 0
        %1807 = vmatprep.subr.bf16.mxu0 0
        %1808 = vmatpush1.bf16.msra.mxu0 0
        %1809 = vmatprep.subr.bf16.mxu0 0
        %1810 = vmatpush1.bf16.msra.mxu0 0
        %1811 = vmatprep.subr.bf16.mxu0 0
        %1812 = vmatpush1.bf16.msra.mxu0 0
        %1813 = vmatprep.subr.bf16.mxu0 0
        %1814 = vmatpush1.bf16.msra.mxu0 0
        %1815 = vmatprep.subr.bf16.mxu0 0
        %1816 = vmatpush1.bf16.msra.mxu0 0
        %1817 = vmatprep.subr.bf16.mxu0 0
        %1818 = vmatpush1.bf16.msra.mxu0 0
        %1819 = vmatprep.subr.bf16.mxu0 0
        %1820 = vmatpush1.bf16.msra.mxu0 0
        %1821 = vmatprep.subr.bf16.mxu0 0
        %1822 = vmatpush1.bf16.msra.mxu0 0
        %1823 = vmatprep.subr.bf16.mxu0 0
        %1824 = vmatpush1.bf16.msra.mxu0 0
        %1825 = vmatprep.subr.bf16.mxu0 0
        %1826 = vmatpush1.bf16.msra.mxu0 0
        %1827 = vmatprep.subr.bf16.mxu0 0
        %1828 = vmatpush1.bf16.msra.mxu0 0
        %1829 = vmatprep.mubr.bf16.mxu0 0
        %1830 = vmatmul.mubr.bf16.gmra.mrb[0].mxu0 %v1795
        %v1831 = vpop.f32.mrb[0].mxu0
        %v1832 = vadd.f32 0.0, %v1831
        %v1833 = vpop.f32.mrb[0].mxu0
        %v1834 = vpop.f32.mrb[0].mxu0
        %v1835 = vpop.f32.mrb[0].mxu0
        %1836 = vdwg.mxu0
        %v1837 = vadd.f32 %v1507, %v1685
        %v1838 = vadd.f32 %v1550, %v1734
        %v1839 = vadd.f32 %v1593, %v1783
        %v1840 = vadd.f32 %v1636, %v1832
        %v1842 = vrot.slane %v1250, 4
        %1843 = vrot.lane.b32.xlu0 %v824, 32
        %v1844 = vpop.permute.xlu0 %1843
        %1845 = vrot.lane.b32.xlu0 %v825, 32
        %v1846 = vpop.permute.xlu0 %1845
        %v1850 = vsel %vm846, %v1842, 0
        %1852 = vmatprep.subr.bf16.mxu0 0
        %1853 = vmatpush1.bf16.msra.mxu0 %v1844
        %1854 = vmatprep.subr.bf16.mxu0 0
        %1855 = vmatpush1.bf16.msra.mxu0 %v1846
        %1856 = vmatprep.subr.bf16.mxu0 0
        %1857 = vmatpush1.bf16.msra.mxu0 0
        %1858 = vmatprep.subr.bf16.mxu0 0
        %1859 = vmatpush1.bf16.msra.mxu0 0
        %1860 = vmatprep.subr.bf16.mxu0 0
        %1861 = vmatpush1.bf16.msra.mxu0 0
        %1862 = vmatprep.subr.bf16.mxu0 0
        %1863 = vmatpush1.bf16.msra.mxu0 0
        %1864 = vmatprep.subr.bf16.mxu0 0
        %1865 = vmatpush1.bf16.msra.mxu0 0
        %1866 = vmatprep.subr.bf16.mxu0 0
        %1867 = vmatpush1.bf16.msra.mxu0 0
        %1868 = vmatprep.subr.bf16.mxu0 0
        %1869 = vmatpush1.bf16.msra.mxu0 0
        %1870 = vmatprep.subr.bf16.mxu0 0
        %1871 = vmatpush1.bf16.msra.mxu0 0
        %1872 = vmatprep.subr.bf16.mxu0 0
        %1873 = vmatpush1.bf16.msra.mxu0 0
        %1874 = vmatprep.subr.bf16.mxu0 0
        %1875 = vmatpush1.bf16.msra.mxu0 0
        %1876 = vmatprep.subr.bf16.mxu0 0
        %1877 = vmatpush1.bf16.msra.mxu0 0
        %1878 = vmatprep.subr.bf16.mxu0 0
        %1879 = vmatpush1.bf16.msra.mxu0 0
        %1880 = vmatprep.subr.bf16.mxu0 0
        %1881 = vmatpush1.bf16.msra.mxu0 0
        %1882 = vmatprep.subr.bf16.mxu0 0
        %1883 = vmatpush1.bf16.msra.mxu0 0
        %1884 = vmatprep.mubr.bf16.mxu0 0
        %1885 = vmatmul.mubr.bf16.gmra.mrb[0].mxu0 %v1850
        %v1886 = vpop.f32.mrb[0].mxu0
        %v1887 = vadd.f32 0.0, %v1886
        %v1888 = vpop.f32.mrb[0].mxu0
        %v1889 = vpop.f32.mrb[0].mxu0
        %v1890 = vpop.f32.mrb[0].mxu0
        %1891 = vdwg.mxu0
        %v1893 = vrot.slane %v1252, 4
        %1894 = vrot.lane.b32.xlu0 %v826, 32
        %v1895 = vpop.permute.xlu0 %1894
        %1896 = vrot.lane.b32.xlu0 %v827, 32
        %v1897 = vpop.permute.xlu0 %1896
        %v1901 = vsel %vm846, %v1893, 0
        %1903 = vmatprep.subr.bf16.mxu0 0
        %1904 = vmatpush1.bf16.msra.mxu0 %v1895
        %1905 = vmatprep.subr.bf16.mxu0 0
        %1906 = vmatpush1.bf16.msra.mxu0 %v1897
        %1907 = vmatprep.subr.bf16.mxu0 0
        %1908 = vmatpush1.bf16.msra.mxu0 0
        %1909 = vmatprep.subr.bf16.mxu0 0
        %1910 = vmatpush1.bf16.msra.mxu0 0
        %1911 = vmatprep.subr.bf16.mxu0 0
        %1912 = vmatpush1.bf16.msra.mxu0 0
        %1913 = vmatprep.subr.bf16.mxu0 0
        %1914 = vmatpush1.bf16.msra.mxu0 0
        %1915 = vmatprep.subr.bf16.mxu0 0
        %1916 = vmatpush1.bf16.msra.mxu0 0
        %1917 = vmatprep.subr.bf16.mxu0 0
        %1918 = vmatpush1.bf16.msra.mxu0 0
        %1919 = vmatprep.subr.bf16.mxu0 0
        %1920 = vmatpush1.bf16.msra.mxu0 0
        %1921 = vmatprep.subr.bf16.mxu0 0
        %1922 = vmatpush1.bf16.msra.mxu0 0
        %1923 = vmatprep.subr.bf16.mxu0 0
        %1924 = vmatpush1.bf16.msra.mxu0 0
        %1925 = vmatprep.subr.bf16.mxu0 0
        %1926 = vmatpush1.bf16.msra.mxu0 0
        %1927 = vmatprep.subr.bf16.mxu0 0
        %1928 = vmatpush1.bf16.msra.mxu0 0
        %1929 = vmatprep.subr.bf16.mxu0 0
        %1930 = vmatpush1.bf16.msra.mxu0 0
        %1931 = vmatprep.subr.bf16.mxu0 0
        %1932 = vmatpush1.bf16.msra.mxu0 0
        %1933 = vmatprep.subr.bf16.mxu0 0
        %1934 = vmatpush1.bf16.msra.mxu0 0
        %1935 = vmatprep.mubr.bf16.mxu0 0
        %1936 = vmatmul.mubr.bf16.gmra.mrb[0].mxu0 %v1901
        %v1937 = vpop.f32.mrb[0].mxu0
        %v1938 = vadd.f32 0.0, %v1937
        %v1939 = vpop.f32.mrb[0].mxu0
        %v1940 = vpop.f32.mrb[0].mxu0
        %v1941 = vpop.f32.mrb[0].mxu0
        %1942 = vdwg.mxu0
        %v1944 = vrot.slane %v1254, 4
        %1945 = vrot.lane.b32.xlu0 %v828, 32
        %v1946 = vpop.permute.xlu0 %1945
        %1947 = vrot.lane.b32.xlu0 %v829, 32
        %v1948 = vpop.permute.xlu0 %1947
        %v1952 = vsel %vm846, %v1944, 0
        %1954 = vmatprep.subr.bf16.mxu0 0
        %1955 = vmatpush1.bf16.msra.mxu0 %v1946
        %1956 = vmatprep.subr.bf16.mxu0 0
        %1957 = vmatpush1.bf16.msra.mxu0 %v1948
        %1958 = vmatprep.subr.bf16.mxu0 0
        %1959 = vmatpush1.bf16.msra.mxu0 0
        %1960 = vmatprep.subr.bf16.mxu0 0
        %1961 = vmatpush1.bf16.msra.mxu0 0
        %1962 = vmatprep.subr.bf16.mxu0 0
        %1963 = vmatpush1.bf16.msra.mxu0 0
        %1964 = vmatprep.subr.bf16.mxu0 0
        %1965 = vmatpush1.bf16.msra.mxu0 0
        %1966 = vmatprep.subr.bf16.mxu0 0
        %1967 = vmatpush1.bf16.msra.mxu0 0
        %1968 = vmatprep.subr.bf16.mxu0 0
        %1969 = vmatpush1.bf16.msra.mxu0 0
        %1970 = vmatprep.subr.bf16.mxu0 0
        %1971 = vmatpush1.bf16.msra.mxu0 0
        %1972 = vmatprep.subr.bf16.mxu0 0
        %1973 = vmatpush1.bf16.msra.mxu0 0
        %1974 = vmatprep.subr.bf16.mxu0 0
        %1975 = vmatpush1.bf16.msra.mxu0 0
        %1976 = vmatprep.subr.bf16.mxu0 0
        %1977 = vmatpush1.bf16.msra.mxu0 0
        %1978 = vmatprep.subr.bf16.mxu0 0
        %1979 = vmatpush1.bf16.msra.mxu0 0
        %1980 = vmatprep.subr.bf16.mxu0 0
        %1981 = vmatpush1.bf16.msra.mxu0 0
        %1982 = vmatprep.subr.bf16.mxu0 0
        %1983 = vmatpush1.bf16.msra.mxu0 0
        %1984 = vmatprep.subr.bf16.mxu0 0
        %1985 = vmatpush1.bf16.msra.mxu0 0
        %1986 = vmatprep.mubr.bf16.mxu0 0
        %1987 = vmatmul.mubr.bf16.gmra.mrb[0].mxu0 %v1952
        %v1988 = vpop.f32.mrb[0].mxu0
        %v1989 = vadd.f32 0.0, %v1988
        %v1990 = vpop.f32.mrb[0].mxu0
        %v1991 = vpop.f32.mrb[0].mxu0
        %v1992 = vpop.f32.mrb[0].mxu0
        %1993 = vdwg.mxu0
        %v1995 = vrot.slane %v1256, 4
        %1996 = vrot.lane.b32.xlu0 %v830, 32
        %v1997 = vpop.permute.xlu0 %1996
        %1998 = vrot.lane.b32.xlu0 %v831, 32
        %v1999 = vpop.permute.xlu0 %1998
        %v2003 = vsel %vm846, %v1995, 0
        %2005 = vmatprep.subr.bf16.mxu0 0
        %2006 = vmatpush1.bf16.msra.mxu0 %v1997
        %2007 = vmatprep.subr.bf16.mxu0 0
        %2008 = vmatpush1.bf16.msra.mxu0 %v1999
        %2009 = vmatprep.subr.bf16.mxu0 0
        %2010 = vmatpush1.bf16.msra.mxu0 0
        %2011 = vmatprep.subr.bf16.mxu0 0
        %2012 = vmatpush1.bf16.msra.mxu0 0
        %2013 = vmatprep.subr.bf16.mxu0 0
        %2014 = vmatpush1.bf16.msra.mxu0 0
        %2015 = vmatprep.subr.bf16.mxu0 0
        %2016 = vmatpush1.bf16.msra.mxu0 0
        %2017 = vmatprep.subr.bf16.mxu0 0
        %2018 = vmatpush1.bf16.msra.mxu0 0
        %2019 = vmatprep.subr.bf16.mxu0 0
        %2020 = vmatpush1.bf16.msra.mxu0 0
        %2021 = vmatprep.subr.bf16.mxu0 0
        %2022 = vmatpush1.bf16.msra.mxu0 0
        %2023 = vmatprep.subr.bf16.mxu0 0
        %2024 = vmatpush1.bf16.msra.mxu0 0
        %2025 = vmatprep.subr.bf16.mxu0 0
        %2026 = vmatpush1.bf16.msra.mxu0 0
        %2027 = vmatprep.subr.bf16.mxu0 0
        %2028 = vmatpush1.bf16.msra.mxu0 0
        %2029 = vmatprep.subr.bf16.mxu0 0
        %2030 = vmatpush1.bf16.msra.mxu0 0
        %2031 = vmatprep.subr.bf16.mxu0 0
        %2032 = vmatpush1.bf16.msra.mxu0 0
        %2033 = vmatprep.subr.bf16.mxu0 0
        %2034 = vmatpush1.bf16.msra.mxu0 0
        %2035 = vmatprep.subr.bf16.mxu0 0
        %2036 = vmatpush1.bf16.msra.mxu0 0
        %2037 = vmatprep.mubr.bf16.mxu0 0
        %2038 = vmatmul.mubr.bf16.gmra.mrb[0].mxu0 %v2003
        %v2039 = vpop.f32.mrb[0].mxu0
        %v2040 = vadd.f32 0.0, %v2039
        %v2041 = vpop.f32.mrb[0].mxu0
        %v2042 = vpop.f32.mrb[0].mxu0
        %v2043 = vpop.f32.mrb[0].mxu0
        %2044 = vdwg.mxu0
        %v2045 = vadd.f32 %v1837, %v1887
        %v2046 = vadd.f32 %v1838, %v1938
        %v2047 = vadd.f32 %v1839, %v1989
        %v2048 = vadd.f32 %v1840, %v2040
        %v2049 = vld [vmem:[%s5] sm:$0x1]
        %v2051 = vlaneseq
        %v2052 = vshrl.u32 %v2051, 7
        %v2053 = vsub.s32 0, %v2052
        %v2054 = vrot.slane %v2049, %v2053
        %v2056 = vadd.f32 %v2045, %v2054
        %v2057 = vadd.f32 %v2046, %v2054
        %v2058 = vadd.f32 %v2047, %v2054
        %v2059 = vadd.f32 %v2048, %v2054
        %2060 = vst.msk [vmem:[%s270] sm:$0xff] %vm846, %v2056
        %2061 = vst.msk [vmem:[%s270 + $0x8] sm:$0xff] %vm846, %v2057
        %2062 = vst.msk [vmem:[%s270 + $0x10] sm:$0xff] %vm846, %v2058
        %2063 = vst.msk [vmem:[%s270 + $0x18] sm:$0xff] %vm846, %v2059
        %s2064 = sand.u32 %s162, 1
        %s2065 = scalar_lea.sflag [#allocation4], %s2064
        %s2066 = sand.u32 %s162, 1
        %s2067 = smul.addr %s2066, 32
        %s2068 = scalar_lea.vmem [#allocation5], %s2067
        // Predicated region
        $region49: #{tpu_custom_call.1} parent=43 // pred_check
          %p2069 = pneg %p172
        $region50: #{tpu_custom_call.1} parent=43 // pred_check_branch
          %2071 = sbr.rel (%p2069) target = $region52
        $region51: #{tpu_custom_call.1} parent=43 // pred_region
          %s2072 = smul.u32 4, %s23
          %s2074 = ssub.s32 512, 512
          %2075 = vsyncadd %s2065, %s2074
          %s2076 = smul.addr %s2072, 128
          %s2077 = scalar_lea.hbm %s6, %s2076
          %s2078 = sshll.u32 %s2068, 4
          %s2079 = int_to_ptr.vmem [resolvable:$true] %s2078
          %2084 = dma.vmem_to_hbm [thread:$0]  %s2079, 512, %s2077, %s2065, 128, 128, 8
        $region52: #{tpu_custom_call.1} parent=43 // pred_fallthru
          _
      $region44: #{tpu_custom_call.1} parent=5 // pred_fallthru
        _
      %p2085 = scmp.le.s32.totalorder 2, %s18
      // Predicated region
      $region53: #{tpu_custom_call.1} parent=5 // pred_check
        %p2086 = pneg %p2085
      $region54: #{tpu_custom_call.1} parent=5 // pred_check_branch
        %2088 = sbr.rel (%p2086) target = $region56
      $region55: #{tpu_custom_call.1} parent=5 // pred_region
        %s2089 = ssub.s32 %s18, 2
        // Predicated region
        $region57: #{tpu_custom_call.1} parent=55 // pred_check
          %p2090 = pneg %p178
        $region58: #{tpu_custom_call.1} parent=55 // pred_check_branch
          %2092 = sbr.rel (%p2090) target = $region60
        $region59: #{tpu_custom_call.1} parent=55 // pred_region
          %s2093 = sand.u32 %s163, 1
          %s2094 = scalar_lea.sflag [#allocation4], %s2093
          %s2095 = sand.u32 %s163, 1
          %s2096 = smul.addr %s2095, 32
          %s2097 = scalar_lea.vmem [#allocation5], %s2096
          %2098 = dma.done %s2094, 512
        $region60: #{tpu_custom_call.1} parent=55 // pred_fallthru
          _
      $region56: #{tpu_custom_call.1} parent=5 // pred_fallthru
        _
    $region6: #{tpu_custom_call.1} parent=1 // loop_footer
      %s22 = sadd.s32 1, %s18
    $region7: #{tpu_custom_call.1} parent=1 // loop_footer_branch
      %17 = sbr.rel target = $region3
    $region8: #{tpu_custom_call.1} parent=1 // loop_exit
      _
    %2099 = vsyncpa [#allocation3], 1
    %s2100 = scalar_lea.sflag [#allocation3], 1
    %2101 = vsyncpa %s2100, 1
    %2102 = vsyncpa [#allocation4], 1
    %s2103 = scalar_lea.sflag [#allocation4], 1
    %2104 = vsyncpa %s2103, 1

</llo_original>
